<compile_context>
chip_gen: v6e
topology: v6e:2x2x1
jax: 0.10.0
libtpu: 0.0.40
codegen_flags: <defaults>
</compile_context>

<pallas_src>
import functools

import jax
import jax.numpy as jnp
from jax.experimental import pallas as pl
from jax.experimental.pallas import tpu as pltpu


def _round_up(x, m):
    return (x + m - 1) // m * m


# Which logical layers share a packed weight block (row-concatenated).
_PACK_GROUPS = ((0,), (1, 2), (3, 4, 5))


def make_mlp_d_kernel(plan, batch, tile_b, n_packs):
    """Fused MLP_D forward for one batch tile.

    plan: static tuple of (pack_idx, row_start, row_end, d_out_padded) per layer.
    """
    n_layers = len(plan)

    def kernel(x_ref, *refs):
        w_refs = refs[:n_packs]          # packed bf16 weight blocks (VMEM-resident)
        bias_ref = refs[n_packs]         # (16, max_out) bf16, one row per layer
        out_ref = refs[n_packs + 1]      # (1, 128) f32 accumulator (resident)

        biases = bias_ref[...].astype(jnp.float32)
        h = x_ref[...]                   # (tile_b, 1024) bf16
        for i, (which, r0, r1, d_out) in enumerate(plan):
            w = w_refs[which][r0:r1, :d_out]          # static ref slice (bf16, no copy)
            a = h if h.dtype == jnp.bfloat16 else h.astype(jnp.bfloat16)
            acc = jnp.dot(a, w, preferred_element_type=jnp.float32)
            h = acc + biases[i:i + 1, :d_out]         # f32 bias add
            if i < n_layers - 1:                      # ReLU on all but the last layer
                h = jnp.maximum(h, 0.0)

        # Masked batch-sum over the *true* rows of this tile, scaled by 1/batch,
        # accumulated across grid steps -> matches output.mean(0) in PyTorch.
        row = pl.program_id(0) * tile_b + jax.lax.broadcasted_iota(jnp.int32, h.shape, 0)
        h = jnp.where(row < batch, h, 0.0)
        partial = jnp.sum(h, axis=0, keepdims=True) * (1.0 / batch)

        @pl.when(pl.program_id(0) == 0)
        def _():
            out_ref[...] = jnp.zeros_like(out_ref)

        out_ref[...] += partial

    return kernel


def init_params(key, dims):
    """PyTorch nn.Linear-style init: U(-1/sqrt(fan_in), 1/sqrt(fan_in)).

    Returns logical f32 params [w1, b1, ..., w6, b6] with w: (d_in, d_out),
    b: (d_out,). (A direct port of torch weights would need w = w_torch.T.)
    """
    params = []
    for d_in, d_out in zip(dims[:-1], dims[1:]):
        key, kw, kb = jax.random.split(key, 3)
        bound = 1.0 / float(d_in) ** 0.5
        w = jax.random.uniform(kw, (d_in, d_out), jnp.float32, -bound, bound)
        b = jax.random.uniform(kb, (d_out,), jnp.float32, -bound, bound)
        params += [w, b]
    return params


def pack_params(params, dims, dims_padded):
    """Zero-pad weights lane-dense, concat into 3 bf16 blocks, pack biases (bf16)."""
    n_layers = len(dims) - 1
    assert n_layers == sum(len(g) for g in _PACK_GROUPS)

    # Per-layer lane/row zero-padded f32 weights.
    padded = []
    for i in range(n_layers):
        w = params[2 * i]
        d_in_p, d_out_p = dims_padded[i], dims_padded[i + 1]
        wp = jnp.zeros((d_in_p, d_out_p), jnp.float32).at[: w.shape[0], : w.shape[1]].set(w)
        padded.append(wp)

    # All biases in one (16, max_out) bf16 block (16 rows = bf16 sublane tile).
    max_out = max(dims_padded[1:])
    bias_pack = jnp.zeros((16, max_out), jnp.float32)
    for i in range(n_layers):
        b = params[2 * i + 1]
        bias_pack = bias_pack.at[i, : b.shape[0]].set(b)
    bias_pack = bias_pack.astype(jnp.bfloat16)

    # Row-concatenate each group into a single bf16 block; record static slices.
    packs, plan = [], []
    for g, group in enumerate(_PACK_GROUPS):
        lane_w = max(dims_padded[l + 1] for l in group)
        rows, r = [], 0
        for l in group:
            d_in_p, d_out_p = dims_padded[l], dims_padded[l + 1]
            wp = jnp.zeros((d_in_p, lane_w), jnp.float32).at[:, :d_out_p].set(padded[l])
            rows.append(wp)
            plan.append((g, r, r + d_in_p, d_out_p))
            r += d_in_p
        packs.append(jnp.concatenate(rows, axis=0).astype(jnp.bfloat16))

    return tuple(packs), bias_pack, tuple(plan)


@functools.partial(jax.jit, static_argnames=("plan", "dims_padded", "batch_tile"))
def mlp_d_forward(x_nchw, packs, bias_pack, *, plan, dims_padded, batch_tile=16):
    """x_nchw: (B, nc, isize, isize) -> (1,) batch-mean logit."""
    B = x_nchw.shape[0]
    d_in = dims_padded[0]
    d_out_lanes = dims_padded[-1]
    b_pad = _round_up(max(B, batch_tile), batch_tile)
    num_tiles = b_pad // batch_tile

    # Pad/cast x inside the same jit region as the kernel (no extra dispatch).
    x2 = x_nchw.reshape(B, -1).astype(jnp.bfloat16)
    x_p = jnp.zeros((b_pad, d_in), jnp.bfloat16).at[:B, : x2.shape[1]].set(x2)

    kernel = make_mlp_d_kernel(plan, B, batch_tile, len(packs))

    flops = 2 * b_pad * sum((r1 - r0) * d for (_, r0, r1, d) in plan)
    bytes_accessed = (
        b_pad * d_in * 2
        + sum(int(p.shape[0]) * int(p.shape[1]) for p in packs) * 2
        + int(bias_pack.shape[0]) * int(bias_pack.shape[1]) * 2
        + d_out_lanes * 4
    )

    grid_spec = pltpu.PrefetchScalarGridSpec(
        num_scalar_prefetch=0,
        grid=(num_tiles,),
        in_specs=(
            [pl.BlockSpec((batch_tile, d_in), lambda i: (i, 0))]
            # Weights / biases: constant block (0, 0) -> DMA'd once, VMEM-resident
            # across all batch tiles.
            + [pl.BlockSpec(tuple(p.shape), lambda i: (0, 0)) for p in packs]
            + [pl.BlockSpec(tuple(bias_pack.shape), lambda i: (0, 0))]
        ),
        out_specs=pl.BlockSpec((1, d_out_lanes), lambda i: (0, 0)),
    )

    y = pl.pallas_call(
        kernel,
        out_shape=jax.ShapeDtypeStruct((1, d_out_lanes), jnp.float32),
        grid_spec=grid_spec,
        compiler_params=pltpu.CompilerParams(
            dimension_semantics=("arbitrary",)),  # batch axis carries the reduction
        cost_estimate=pl.CostEstimate(
            flops=flops, transcendentals=0, bytes_accessed=bytes_accessed),
    )(x_p, *packs, bias_pack)

    return y[0, 0].reshape(1)


def mlp_d_reference(x_nchw, params):
    """Pure-JAX f32 reference matching the PyTorch MLP_D forward."""
    B = x_nchw.shape[0]
    h = x_nchw.reshape(B, -1).astype(jnp.float32)
    n_layers = len(params) // 2
    for i in range(n_layers):
        h = h @ params[2 * i] + params[2 * i + 1]
        if i < n_layers - 1:
            h = jnp.maximum(h, 0.0)
    return jnp.mean(h, axis=0).reshape(1)


if __name__ == "__main__":
    # Module hyperparams (small but consistent with MLP_D's forward):
    isize, nz, nc, ndf, ngpu = 16, 8, 4, 32, 1
    batch = 2

    dims = (nc * isize * isize, 512, 384, 256, 128, 64, 1)
    dims_padded = tuple(_round_up(d, 128) for d in dims)   # lane-dense layer widths

    key = jax.random.PRNGKey(0)
    key, kx = jax.random.split(key)
    x = jax.random.normal(kx, (batch, nc, isize, isize), jnp.float32)
    params = init_params(key, dims)
    packs, bias_pack, plan = pack_params(params, dims, dims_padded)

    out = mlp_d_forward(x, packs, bias_pack, plan=plan,
                        dims_padded=dims_padded, batch_tile=16)
    out = jax.block_until_ready(out)

    ref = mlp_d_reference(x, params)
    assert out.shape == (1,)
    # bf16 weights/biases/inputs (f32 accumulation) -> looser tolerance vs f32 ref.
    assert jnp.allclose(out, ref, atol=2e-2, rtol=2e-2), (out, ref)

    print("KERNEL_OK")
</pallas_src>

<mosaic_0001>
module attributes {stable_mosaic.version = 11 : i64} {
  func.func @kernel(%arg0: i32, %arg1: memref<16x1024xbf16, #tpu.memory_space<vmem>>, %arg2: memref<1024x512xbf16, #tpu.memory_space<vmem>>, %arg3: memref<896x384xbf16, #tpu.memory_space<vmem>>, %arg4: memref<512x128xbf16, #tpu.memory_space<vmem>>, %arg5: memref<16x512xbf16, #tpu.memory_space<vmem>>, %arg6: memref<1x128xf32, #tpu.memory_space<vmem>>) attributes {dimension_semantics = [#tpu.dimension_semantics<arbitrary>], iteration_bounds = array<i64: 1>, scalar_prefetch = 0 : i64, scratch_operands = 0 : i64, tpu.core_type = #tpu.core_type<tc>, window_params = [{transform_indices = @transform_0, window_bounds = array<i64: 16, 1024>}, {pipeline_mode = #tpu.pipeline_mode<synchronous>, transform_indices = @transform_1, window_bounds = array<i64: 1024, 512>}, {pipeline_mode = #tpu.pipeline_mode<synchronous>, transform_indices = @transform_2, window_bounds = array<i64: 896, 384>}, {pipeline_mode = #tpu.pipeline_mode<synchronous>, transform_indices = @transform_3, window_bounds = array<i64: 512, 128>}, {pipeline_mode = #tpu.pipeline_mode<synchronous>, transform_indices = @transform_4, window_bounds = array<i64: 16, 512>}, {pipeline_mode = #tpu.pipeline_mode<synchronous>, transform_indices = @transform_5, window_bounds = array<i64: 1, 128>}]} {
    %c0 = arith.constant 0 : index
    %c0_0 = arith.constant 0 : index
    %0 = vector.load %arg5[%c0, %c0_0] : memref<16x512xbf16, #tpu.memory_space<vmem>>, vector<16x512xbf16>
    %1 = arith.extf %0 : vector<16x512xbf16> to vector<16x512xf32>
    %c0_1 = arith.constant 0 : index
    %c0_2 = arith.constant 0 : index
    %2 = vector.load %arg1[%c0_1, %c0_2] : memref<16x1024xbf16, #tpu.memory_space<vmem>>, vector<16x1024xbf16>
    %c0_3 = arith.constant 0 : index
    %c0_4 = arith.constant 0 : index
    %3 = vector.load %arg2[%c0_3, %c0_4] : memref<1024x512xbf16, #tpu.memory_space<vmem>>, vector<1024x512xbf16>
    %cst = arith.constant dense<0.000000e+00> : vector<16x512xf32>
    %4 = tpu.matmul %2, %3, %cst {dimension_numbers = #tpu.dot_dimension_numbers<[1], [0], [0], [1], [0, 0, 1, 1], [], []>} : vector<16x1024xbf16>, vector<1024x512xbf16>, vector<16x512xf32> -> vector<16x512xf32>
    %5 = vector.extract_strided_slice %1 {offsets = [0, 0], sizes = [1, 512], strides = [1, 1]} : vector<16x512xf32> to vector<1x512xf32>
    %6 = vector.broadcast %5 : vector<1x512xf32> to vector<16x512xf32>
    %7 = arith.addf %4, %6 : vector<16x512xf32>
    %cst_5 = arith.constant 0.000000e+00 : f32
    %8 = vector.broadcast %cst_5 : f32 to vector<16x512xf32>
    %9 = arith.maximumf %7, %8 : vector<16x512xf32>
    %c0_6 = arith.constant 0 : index
    %c0_7 = arith.constant 0 : index
    %10 = vector.load %arg3[%c0_6, %c0_7] : memref<896x384xbf16, #tpu.memory_space<vmem>>, vector<512x384xbf16>
    %11 = arith.truncf %9 : vector<16x512xf32> to vector<16x512xbf16>
    %cst_8 = arith.constant dense<0.000000e+00> : vector<16x384xf32>
    %12 = tpu.matmul %11, %10, %cst_8 {dimension_numbers = #tpu.dot_dimension_numbers<[1], [0], [0], [1], [0, 0, 1, 1], [], []>} : vector<16x512xbf16>, vector<512x384xbf16>, vector<16x384xf32> -> vector<16x384xf32>
    %13 = vector.extract_strided_slice %1 {offsets = [1, 0], sizes = [1, 384], strides = [1, 1]} : vector<16x512xf32> to vector<1x384xf32>
    %14 = vector.broadcast %13 : vector<1x384xf32> to vector<16x384xf32>
    %15 = arith.addf %12, %14 : vector<16x384xf32>
    %cst_9 = arith.constant 0.000000e+00 : f32
    %16 = vector.broadcast %cst_9 : f32 to vector<16x384xf32>
    %17 = arith.maximumf %15, %16 : vector<16x384xf32>
    %c512 = arith.constant 512 : index
    %c0_10 = arith.constant 0 : index
    %18 = vector.load %arg3[%c512, %c0_10] : memref<896x384xbf16, #tpu.memory_space<vmem>>, vector<384x256xbf16>
    %19 = arith.truncf %17 : vector<16x384xf32> to vector<16x384xbf16>
    %cst_11 = arith.constant dense<0.000000e+00> : vector<16x256xf32>
    %20 = tpu.matmul %19, %18, %cst_11 {dimension_numbers = #tpu.dot_dimension_numbers<[1], [0], [0], [1], [0, 0, 1, 1], [], []>} : vector<16x384xbf16>, vector<384x256xbf16>, vector<16x256xf32> -> vector<16x256xf32>
    %21 = vector.extract_strided_slice %1 {offsets = [2, 0], sizes = [1, 256], strides = [1, 1]} : vector<16x512xf32> to vector<1x256xf32>
    %22 = vector.broadcast %21 : vector<1x256xf32> to vector<16x256xf32>
    %23 = arith.addf %20, %22 : vector<16x256xf32>
    %cst_12 = arith.constant 0.000000e+00 : f32
    %24 = vector.broadcast %cst_12 : f32 to vector<16x256xf32>
    %25 = arith.maximumf %23, %24 : vector<16x256xf32>
    %c0_13 = arith.constant 0 : index
    %c0_14 = arith.constant 0 : index
    %26 = vector.load %arg4[%c0_13, %c0_14] : memref<512x128xbf16, #tpu.memory_space<vmem>>, vector<256x128xbf16>
    %27 = arith.truncf %25 : vector<16x256xf32> to vector<16x256xbf16>
    %cst_15 = arith.constant dense<0.000000e+00> : vector<16x128xf32>
    %28 = tpu.matmul %27, %26, %cst_15 {dimension_numbers = #tpu.dot_dimension_numbers<[1], [0], [0], [1], [0, 0, 1, 1], [], []>} : vector<16x256xbf16>, vector<256x128xbf16>, vector<16x128xf32> -> vector<16x128xf32>
    %29 = vector.extract_strided_slice %1 {offsets = [3, 0], sizes = [1, 128], strides = [1, 1]} : vector<16x512xf32> to vector<1x128xf32>
    %30 = vector.broadcast %29 : vector<1x128xf32> to vector<16x128xf32>
    %31 = arith.addf %28, %30 : vector<16x128xf32>
    %cst_16 = arith.constant 0.000000e+00 : f32
    %32 = vector.broadcast %cst_16 : f32 to vector<16x128xf32>
    %33 = arith.maximumf %31, %32 : vector<16x128xf32>
    %c256 = arith.constant 256 : index
    %c0_17 = arith.constant 0 : index
    %34 = vector.load %arg4[%c256, %c0_17] : memref<512x128xbf16, #tpu.memory_space<vmem>>, vector<128x128xbf16>
    %35 = arith.truncf %33 : vector<16x128xf32> to vector<16x128xbf16>
    %cst_18 = arith.constant dense<0.000000e+00> : vector<16x128xf32>
    %36 = tpu.matmul %35, %34, %cst_18 {dimension_numbers = #tpu.dot_dimension_numbers<[1], [0], [0], [1], [0, 0, 1, 1], [], []>} : vector<16x128xbf16>, vector<128x128xbf16>, vector<16x128xf32> -> vector<16x128xf32>
    %37 = vector.extract_strided_slice %1 {offsets = [4, 0], sizes = [1, 128], strides = [1, 1]} : vector<16x512xf32> to vector<1x128xf32>
    %38 = vector.broadcast %37 : vector<1x128xf32> to vector<16x128xf32>
    %39 = arith.addf %36, %38 : vector<16x128xf32>
    %cst_19 = arith.constant 0.000000e+00 : f32
    %40 = vector.broadcast %cst_19 : f32 to vector<16x128xf32>
    %41 = arith.maximumf %39, %40 : vector<16x128xf32>
    %c384 = arith.constant 384 : index
    %c0_20 = arith.constant 0 : index
    %42 = vector.load %arg4[%c384, %c0_20] : memref<512x128xbf16, #tpu.memory_space<vmem>>, vector<128x128xbf16>
    %43 = arith.truncf %41 : vector<16x128xf32> to vector<16x128xbf16>
    %cst_21 = arith.constant dense<0.000000e+00> : vector<16x128xf32>
    %44 = tpu.matmul %43, %42, %cst_21 {dimension_numbers = #tpu.dot_dimension_numbers<[1], [0], [0], [1], [0, 0, 1, 1], [], []>} : vector<16x128xbf16>, vector<128x128xbf16>, vector<16x128xf32> -> vector<16x128xf32>
    %45 = vector.extract_strided_slice %1 {offsets = [5, 0], sizes = [1, 128], strides = [1, 1]} : vector<16x512xf32> to vector<1x128xf32>
    %46 = vector.broadcast %45 : vector<1x128xf32> to vector<16x128xf32>
    %47 = arith.addf %44, %46 : vector<16x128xf32>
    %c16_i32 = arith.constant 16 : i32
    %48 = arith.muli %arg0, %c16_i32 : i32
    %49 = tpu.iota {dimensions = array<i32: 0>} : vector<16x128xi32>
    %50 = vector.broadcast %48 : i32 to vector<16x128xi32>
    %51 = arith.addi %50, %49 : vector<16x128xi32>
    %c2_i32 = arith.constant 2 : i32
    %52 = vector.broadcast %c2_i32 : i32 to vector<16x128xi32>
    %53 = arith.cmpi slt, %51, %52 : vector<16x128xi32>
    %cst_22 = arith.constant 0.000000e+00 : f32
    %54 = vector.broadcast %cst_22 : f32 to vector<16x128xf32>
    %55 = arith.select %53, %47, %54 : vector<16x128xi1>, vector<16x128xf32>
    %cst_23 = arith.constant dense<0.000000e+00> : vector<128xf32>
    %56 = vector.multi_reduction <add>, %55, %cst_23 [0] : vector<16x128xf32> to vector<128xf32>
    %57 = vector.shape_cast %56 : vector<128xf32> to vector<1x128xf32>
    %cst_24 = arith.constant 5.000000e-01 : f32
    %58 = vector.broadcast %cst_24 : f32 to vector<1x128xf32>
    %59 = arith.mulf %57, %58 : vector<1x128xf32>
    %c0_i32 = arith.constant 0 : i32
    %60 = arith.cmpi eq, %arg0, %c0_i32 : i32
    %61 = arith.extui %60 : i1 to i32
    %c0_i32_25 = arith.constant 0 : i32
    %62 = arith.cmpi ne, %61, %c0_i32_25 : i32
    scf.if %62 {
      %cst_30 = arith.constant 0.000000e+00 : f32
      %66 = vector.broadcast %cst_30 : f32 to vector<1x128xf32>
      %c0_31 = arith.constant 0 : index
      %c0_32 = arith.constant 0 : index
      %67 = vector.load %arg6[%c0_31, %c0_32] : memref<1x128xf32, #tpu.memory_space<vmem>>, vector<1x128xf32>
      tpu.vector_store %arg6[%c0_31, %c0_32], %66 {strides = array<i32>} : memref<1x128xf32, #tpu.memory_space<vmem>>, vector<1x128xf32>,
    } else {
    }
    %c0_26 = arith.constant 0 : index
    %c0_27 = arith.constant 0 : index
    %63 = vector.load %arg6[%c0_26, %c0_27] : memref<1x128xf32, #tpu.memory_space<vmem>>, vector<1x128xf32>
    %64 = arith.addf %63, %59 : vector<1x128xf32>
    %c0_28 = arith.constant 0 : index
    %c0_29 = arith.constant 0 : index
    %65 = vector.load %arg6[%c0_28, %c0_29] : memref<1x128xf32, #tpu.memory_space<vmem>>, vector<1x128xf32>
    tpu.vector_store %arg6[%c0_28, %c0_29], %64 {strides = array<i32>} : memref<1x128xf32, #tpu.memory_space<vmem>>, vector<1x128xf32>,
    return
  }
  func.func @transform_0(%arg0: i32) -> (i32, i32) {
    %c0_i32 = arith.constant 0 : i32
    %c0_i32_0 = arith.constant 0 : i32
    return %arg0, %c0_i32 : i32, i32
  }
  func.func @transform_1(%arg0: i32) -> (i32, i32) {
    %c0_i32 = arith.constant 0 : i32
    %c0_i32_0 = arith.constant 0 : i32
    %c0_i32_1 = arith.constant 0 : i32
    return %c0_i32, %c0_i32_0 : i32, i32
  }
  func.func @transform_2(%arg0: i32) -> (i32, i32) {
    %c0_i32 = arith.constant 0 : i32
    %c0_i32_0 = arith.constant 0 : i32
    %c0_i32_1 = arith.constant 0 : i32
    return %c0_i32, %c0_i32_0 : i32, i32
  }
  func.func @transform_3(%arg0: i32) -> (i32, i32) {
    %c0_i32 = arith.constant 0 : i32
    %c0_i32_0 = arith.constant 0 : i32
    %c0_i32_1 = arith.constant 0 : i32
    return %c0_i32, %c0_i32_0 : i32, i32
  }
  func.func @transform_4(%arg0: i32) -> (i32, i32) {
    %c0_i32 = arith.constant 0 : i32
    %c0_i32_0 = arith.constant 0 : i32
    %c0_i32_1 = arith.constant 0 : i32
    return %c0_i32, %c0_i32_0 : i32, i32
  }
  func.func @transform_5(%arg0: i32) -> (i32, i32) {
    %c0_i32 = arith.constant 0 : i32
    %c0_i32_0 = arith.constant 0 : i32
    %c0_i32_1 = arith.constant 0 : i32
    return %c0_i32, %c0_i32_0 : i32, i32
  }
}

</mosaic_0001>

<llo_original>
// kernel: mlp_d_forward.1
$region0: #{mlp_d_forward.1}
  #allocation0 [shape = 'u32[]', space=smem, size = 0x4, offset = 0x4, fixed_abs, tag = 'smem constant byte address 0x4 - core index']
  #allocation1 [shape = 'u32[144,128]{1,0:T(1,128)}', space=vmem, size = 0x12000, scoped, tag = 'internal scratch']
  %s0 = inlined_call_operand.vmem [shape: bf16[16,1024], index: 0, kind: input, shape index: {}]
  %s1 = inlined_call_operand.hbm [shape: bf16[1024,512], index: 1, kind: input, shape index: {}]
  %s2 = inlined_call_operand.hbm [shape: bf16[896,384], index: 2, kind: input, shape index: {}]
  %s3 = inlined_call_operand.vmem [shape: bf16[512,128], index: 3, kind: input, shape index: {}]
  %s4 = inlined_call_operand.vmem [shape: bf16[16,512], index: 4, kind: input, shape index: {}]
  %s5 = inlined_call_operand.hbm [shape: f32[1,128], index: 5, kind: output, shape index: {}]
  %s6 = sld [smem:[#allocation0]]
  $region42: #{mlp_d_forward.1} parent=0
    _
  %s8 = ssub.s32 1, %s6
  %s9 = scalar_select 0, %s8, %s6
  $region1: #{mlp_d_forward.1} parent=0
    #allocation2 [shape = 'u8[1048576]{0}', space=vmem, size = 0x100000, scoped, tag = 'input window, operand 1, single buffered']
    #allocation3 [shape = 's32[1]{0}', space=sflag, size = 0x4, scoped, tag = 'scoped memory for mlp_d_forward.1']
    #allocation4 [shape = 's32[1]{0}', space=sflag, size = 0x4, scoped, tag = 'scoped memory for mlp_d_forward.1']
    #allocation5 [shape = 'u8[688128]{0}', space=vmem, size = 0xa8000, scoped, tag = 'input window, operand 2, single buffered']
    #allocation6 [shape = 's32[1]{0}', space=sflag, size = 0x4, scoped, tag = 'scoped memory for mlp_d_forward.1']
    #allocation7 [shape = 'u8[512]{0}', space=vmem, size = 0x400, scoped, tag = 'output window, operand 0, single buffered']
    %10 = vsyncpa [#allocation3], 0
    %11 = vsyncpa [#allocation6], 0
    %12 = vsyncpa [#allocation4], 0
    // Predicated region
    $region2: #{mlp_d_forward.1} parent=1 // pred_check
      _
    $region3: #{mlp_d_forward.1} parent=1 // pred_check_branch
      %14 = sbr.rel (0) target = $region5
    $region4: #{mlp_d_forward.1} parent=1 // pred_region
      _
    $region5: #{mlp_d_forward.1} parent=1 // pred_fallthru
      _
    // Predicated region
    $region6: #{mlp_d_forward.1} parent=1 // pred_check
      _
    $region7: #{mlp_d_forward.1} parent=1 // pred_check_branch
      %16 = sbr.rel (0) target = $region9
    $region8: #{mlp_d_forward.1} parent=1 // pred_region
      %s18 = ssub.s32 32768, 32768
      %19 = vsyncadd [#allocation3], %s18
      %s20 = sshll.u32 [#allocation2], 4
      %s21 = int_to_ptr.vmem [resolvable:$true] %s20
      %26 = dma.hbm_to_vmem [thread:$0]  %s1, 32768, %s21, [#allocation3], 256, 256, 16
    $region9: #{mlp_d_forward.1} parent=1 // pred_fallthru
      _
    // Predicated region
    $region10: #{mlp_d_forward.1} parent=1 // pred_check
      _
    $region11: #{mlp_d_forward.1} parent=1 // pred_check_branch
      %28 = sbr.rel (0) target = $region13
    $region12: #{mlp_d_forward.1} parent=1 // pred_region
      %s30 = ssub.s32 21504, 21504
      %31 = vsyncadd [#allocation6], %s30
      %s32 = sshll.u32 [#allocation5], 4
      %s33 = int_to_ptr.vmem [resolvable:$true] %s32
      %38 = dma.hbm_to_vmem [thread:$0]  %s2, 21504, %s33, [#allocation6], 192, 192, 12
    $region13: #{mlp_d_forward.1} parent=1 // pred_fallthru
      _
    // Predicated region
    $region14: #{mlp_d_forward.1} parent=1 // pred_check
      _
    $region15: #{mlp_d_forward.1} parent=1 // pred_check_branch
      %40 = sbr.rel (0) target = $region17
    $region16: #{mlp_d_forward.1} parent=1 // pred_region
      _
    $region17: #{mlp_d_forward.1} parent=1 // pred_fallthru
      _
    // Predicated region
    $region18: #{mlp_d_forward.1} parent=1 // pred_check
      _
    $region19: #{mlp_d_forward.1} parent=1 // pred_check_branch
      %42 = sbr.rel (0) target = $region21
    $region20: #{mlp_d_forward.1} parent=1 // pred_region
      _
    $region21: #{mlp_d_forward.1} parent=1 // pred_fallthru
      _
    // Predicated region
    $region22: #{mlp_d_forward.1} parent=1 // pred_check
      _
    $region23: #{mlp_d_forward.1} parent=1 // pred_check_branch
      %44 = sbr.rel (0) target = $region25
    $region24: #{mlp_d_forward.1} parent=1 // pred_region
      %45 = dma.done [#allocation3], 32768
    $region25: #{mlp_d_forward.1} parent=1 // pred_fallthru
      _
    // Predicated region
    $region26: #{mlp_d_forward.1} parent=1 // pred_check
      _
    $region27: #{mlp_d_forward.1} parent=1 // pred_check_branch
      %47 = sbr.rel (0) target = $region29
    $region28: #{mlp_d_forward.1} parent=1 // pred_region
      %48 = dma.done [#allocation6], 21504
    $region29: #{mlp_d_forward.1} parent=1 // pred_fallthru
      _
    %v50 = vld [vmem:[%s4] sm:$0xff]
    %v51 = vld [vmem:[%s4 + $0x8] sm:$0xff]
    %v52 = vunpack.c.l.bf16 %v50
    %v53 = vunpack.c.h.bf16 %v50
    %v54 = vunpack.c.l.bf16 %v51
    %v55 = vunpack.c.h.bf16 %v51
    %v56 = vld [vmem:[%s0] sm:$0xff]
    %v57 = vld [vmem:[%s0 + $0x8] sm:$0xff]
    %v58 = vld [vmem:[%s0 + $0x10] sm:$0xff]
    %v59 = vld [vmem:[%s0 + $0x18] sm:$0xff]
    %v60 = vld [vmem:[%s0 + $0x20] sm:$0xff]
    %v61 = vld [vmem:[%s0 + $0x28] sm:$0xff]
    %v62 = vld [vmem:[%s0 + $0x30] sm:$0xff]
    %v63 = vld [vmem:[%s0 + $0x38] sm:$0xff]
    %v64 = vld [vmem:[#allocation2] sm:$0xff]
    %v65 = vld [vmem:[#allocation2 + $0x8] sm:$0xff]
    %v66 = vld [vmem:[#allocation2 + $0x10] sm:$0xff]
    %v67 = vld [vmem:[#allocation2 + $0x18] sm:$0xff]
    %v68 = vld [vmem:[#allocation2 + $0x20] sm:$0xff]
    %v69 = vld [vmem:[#allocation2 + $0x28] sm:$0xff]
    %v70 = vld [vmem:[#allocation2 + $0x30] sm:$0xff]
    %v71 = vld [vmem:[#allocation2 + $0x38] sm:$0xff]
    %v72 = vld [vmem:[#allocation2 + $0x40] sm:$0xff]
    %v73 = vld [vmem:[#allocation2 + $0x48] sm:$0xff]
    %v74 = vld [vmem:[#allocation2 + $0x50] sm:$0xff]
    %v75 = vld [vmem:[#allocation2 + $0x58] sm:$0xff]
    %v76 = vld [vmem:[#allocation2 + $0x60] sm:$0xff]
    %v77 = vld [vmem:[#allocation2 + $0x68] sm:$0xff]
    %v78 = vld [vmem:[#allocation2 + $0x70] sm:$0xff]
    %v79 = vld [vmem:[#allocation2 + $0x78] sm:$0xff]
    %v80 = vld [vmem:[#allocation2 + $0x80] sm:$0xff]
    %v81 = vld [vmem:[#allocation2 + $0x88] sm:$0xff]
    %v82 = vld [vmem:[#allocation2 + $0x90] sm:$0xff]
    %v83 = vld [vmem:[#allocation2 + $0x98] sm:$0xff]
    %v84 = vld [vmem:[#allocation2 + $0xa0] sm:$0xff]
    %v85 = vld [vmem:[#allocation2 + $0xa8] sm:$0xff]
    %v86 = vld [vmem:[#allocation2 + $0xb0] sm:$0xff]
    %v87 = vld [vmem:[#allocation2 + $0xb8] sm:$0xff]
    %v88 = vld [vmem:[#allocation2 + $0xc0] sm:$0xff]
    %v89 = vld [vmem:[#allocation2 + $0xc8] sm:$0xff]
    %v90 = vld [vmem:[#allocation2 + $0xd0] sm:$0xff]
    %v91 = vld [vmem:[#allocation2 + $0xd8] sm:$0xff]
    %v92 = vld [vmem:[#allocation2 + $0xe0] sm:$0xff]
    %v93 = vld [vmem:[#allocation2 + $0xe8] sm:$0xff]
    %v94 = vld [vmem:[#allocation2 + $0xf0] sm:$0xff]
    %v95 = vld [vmem:[#allocation2 + $0xf8] sm:$0xff]
    %v96 = vld [vmem:[#allocation2 + $0x100] sm:$0xff]
    %v97 = vld [vmem:[#allocation2 + $0x108] sm:$0xff]
    %v98 = vld [vmem:[#allocation2 + $0x110] sm:$0xff]
    %v99 = vld [vmem:[#allocation2 + $0x118] sm:$0xff]
    %v100 = vld [vmem:[#allocation2 + $0x120] sm:$0xff]
    %v101 = vld [vmem:[#allocation2 + $0x128] sm:$0xff]
    %v102 = vld [vmem:[#allocation2 + $0x130] sm:$0xff]
    %v103 = vld [vmem:[#allocation2 + $0x138] sm:$0xff]
    %v104 = vld [vmem:[#allocation2 + $0x140] sm:$0xff]
    %v105 = vld [vmem:[#allocation2 + $0x148] sm:$0xff]
    %v106 = vld [vmem:[#allocation2 + $0x150] sm:$0xff]
    %v107 = vld [vmem:[#allocation2 + $0x158] sm:$0xff]
    %v108 = vld [vmem:[#allocation2 + $0x160] sm:$0xff]
    %v109 = vld [vmem:[#allocation2 + $0x168] sm:$0xff]
    %v110 = vld [vmem:[#allocation2 + $0x170] sm:$0xff]
    %v111 = vld [vmem:[#allocation2 + $0x178] sm:$0xff]
    %v112 = vld [vmem:[#allocation2 + $0x180] sm:$0xff]
    %v113 = vld [vmem:[#allocation2 + $0x188] sm:$0xff]
    %v114 = vld [vmem:[#allocation2 + $0x190] sm:$0xff]
    %v115 = vld [vmem:[#allocation2 + $0x198] sm:$0xff]
    %v116 = vld [vmem:[#allocation2 + $0x1a0] sm:$0xff]
    %v117 = vld [vmem:[#allocation2 + $0x1a8] sm:$0xff]
    %v118 = vld [vmem:[#allocation2 + $0x1b0] sm:$0xff]
    %v119 = vld [vmem:[#allocation2 + $0x1b8] sm:$0xff]
    %v120 = vld [vmem:[#allocation2 + $0x1c0] sm:$0xff]
    %v121 = vld [vmem:[#allocation2 + $0x1c8] sm:$0xff]
    %v122 = vld [vmem:[#allocation2 + $0x1d0] sm:$0xff]
    %v123 = vld [vmem:[#allocation2 + $0x1d8] sm:$0xff]
    %v124 = vld [vmem:[#allocation2 + $0x1e0] sm:$0xff]
    %v125 = vld [vmem:[#allocation2 + $0x1e8] sm:$0xff]
    %v126 = vld [vmem:[#allocation2 + $0x1f0] sm:$0xff]
    %v127 = vld [vmem:[#allocation2 + $0x1f8] sm:$0xff]
    %v128 = vld [vmem:[#allocation2 + $0x200] sm:$0xff]
    %v129 = vld [vmem:[#allocation2 + $0x208] sm:$0xff]
    %v130 = vld [vmem:[#allocation2 + $0x210] sm:$0xff]
    %v131 = vld [vmem:[#allocation2 + $0x218] sm:$0xff]
    %v132 = vld [vmem:[#allocation2 + $0x220] sm:$0xff]
    %v133 = vld [vmem:[#allocation2 + $0x228] sm:$0xff]
    %v134 = vld [vmem:[#allocation2 + $0x230] sm:$0xff]
    %v135 = vld [vmem:[#allocation2 + $0x238] sm:$0xff]
    %v136 = vld [vmem:[#allocation2 + $0x240] sm:$0xff]
    %v137 = vld [vmem:[#allocation2 + $0x248] sm:$0xff]
    %v138 = vld [vmem:[#allocation2 + $0x250] sm:$0xff]
    %v139 = vld [vmem:[#allocation2 + $0x258] sm:$0xff]
    %v140 = vld [vmem:[#allocation2 + $0x260] sm:$0xff]
    %v141 = vld [vmem:[#allocation2 + $0x268] sm:$0xff]
    %v142 = vld [vmem:[#allocation2 + $0x270] sm:$0xff]
    %v143 = vld [vmem:[#allocation2 + $0x278] sm:$0xff]
    %v144 = vld [vmem:[#allocation2 + $0x280] sm:$0xff]
    %v145 = vld [vmem:[#allocation2 + $0x288] sm:$0xff]
    %v146 = vld [vmem:[#allocation2 + $0x290] sm:$0xff]
    %v147 = vld [vmem:[#allocation2 + $0x298] sm:$0xff]
    %v148 = vld [vmem:[#allocation2 + $0x2a0] sm:$0xff]
    %v149 = vld [vmem:[#allocation2 + $0x2a8] sm:$0xff]
    %v150 = vld [vmem:[#allocation2 + $0x2b0] sm:$0xff]
    %v151 = vld [vmem:[#allocation2 + $0x2b8] sm:$0xff]
    %v152 = vld [vmem:[#allocation2 + $0x2c0] sm:$0xff]
    %v153 = vld [vmem:[#allocation2 + $0x2c8] sm:$0xff]
    %v154 = vld [vmem:[#allocation2 + $0x2d0] sm:$0xff]
    %v155 = vld [vmem:[#allocation2 + $0x2d8] sm:$0xff]
    %v156 = vld [vmem:[#allocation2 + $0x2e0] sm:$0xff]
    %v157 = vld [vmem:[#allocation2 + $0x2e8] sm:$0xff]
    %v158 = vld [vmem:[#allocation2 + $0x2f0] sm:$0xff]
    %v159 = vld [vmem:[#allocation2 + $0x2f8] sm:$0xff]
    %v160 = vld [vmem:[#allocation2 + $0x300] sm:$0xff]
    %v161 = vld [vmem:[#allocation2 + $0x308] sm:$0xff]
    %v162 = vld [vmem:[#allocation2 + $0x310] sm:$0xff]
    %v163 = vld [vmem:[#allocation2 + $0x318] sm:$0xff]
    %v164 = vld [vmem:[#allocation2 + $0x320] sm:$0xff]
    %v165 = vld [vmem:[#allocation2 + $0x328] sm:$0xff]
    %v166 = vld [vmem:[#allocation2 + $0x330] sm:$0xff]
    %v167 = vld [vmem:[#allocation2 + $0x338] sm:$0xff]
    %v168 = vld [vmem:[#allocation2 + $0x340] sm:$0xff]
    %v169 = vld [vmem:[#allocation2 + $0x348] sm:$0xff]
    %v170 = vld [vmem:[#allocation2 + $0x350] sm:$0xff]
    %v171 = vld [vmem:[#allocation2 + $0x358] sm:$0xff]
    %v172 = vld [vmem:[#allocation2 + $0x360] sm:$0xff]
    %v173 = vld [vmem:[#allocation2 + $0x368] sm:$0xff]
    %v174 = vld [vmem:[#allocation2 + $0x370] sm:$0xff]
    %v175 = vld [vmem:[#allocation2 + $0x378] sm:$0xff]
    %v176 = vld [vmem:[#allocation2 + $0x380] sm:$0xff]
    %v177 = vld [vmem:[#allocation2 + $0x388] sm:$0xff]
    %v178 = vld [vmem:[#allocation2 + $0x390] sm:$0xff]
    %v179 = vld [vmem:[#allocation2 + $0x398] sm:$0xff]
    %v180 = vld [vmem:[#allocation2 + $0x3a0] sm:$0xff]
    %v181 = vld [vmem:[#allocation2 + $0x3a8] sm:$0xff]
    %v182 = vld [vmem:[#allocation2 + $0x3b0] sm:$0xff]
    %v183 = vld [vmem:[#allocation2 + $0x3b8] sm:$0xff]
    %v184 = vld [vmem:[#allocation2 + $0x3c0] sm:$0xff]
    %v185 = vld [vmem:[#allocation2 + $0x3c8] sm:$0xff]
    %v186 = vld [vmem:[#allocation2 + $0x3d0] sm:$0xff]
    %v187 = vld [vmem:[#allocation2 + $0x3d8] sm:$0xff]
    %v188 = vld [vmem:[#allocation2 + $0x3e0] sm:$0xff]
    %v189 = vld [vmem:[#allocation2 + $0x3e8] sm:$0xff]
    %v190 = vld [vmem:[#allocation2 + $0x3f0] sm:$0xff]
    %v191 = vld [vmem:[#allocation2 + $0x3f8] sm:$0xff]
    %v192 = vld [vmem:[#allocation2 + $0x400] sm:$0xff]
    %v193 = vld [vmem:[#allocation2 + $0x408] sm:$0xff]
    %v194 = vld [vmem:[#allocation2 + $0x410] sm:$0xff]
    %v195 = vld [vmem:[#allocation2 + $0x418] sm:$0xff]
    %v196 = vld [vmem:[#allocation2 + $0x420] sm:$0xff]
    %v197 = vld [vmem:[#allocation2 + $0x428] sm:$0xff]
    %v198 = vld [vmem:[#allocation2 + $0x430] sm:$0xff]
    %v199 = vld [vmem:[#allocation2 + $0x438] sm:$0xff]
    %v200 = vld [vmem:[#allocation2 + $0x440] sm:$0xff]
    %v201 = vld [vmem:[#allocation2 + $0x448] sm:$0xff]
    %v202 = vld [vmem:[#allocation2 + $0x450] sm:$0xff]
    %v203 = vld [vmem:[#allocation2 + $0x458] sm:$0xff]
    %v204 = vld [vmem:[#allocation2 + $0x460] sm:$0xff]
    %v205 = vld [vmem:[#allocation2 + $0x468] sm:$0xff]
    %v206 = vld [vmem:[#allocation2 + $0x470] sm:$0xff]
    %v207 = vld [vmem:[#allocation2 + $0x478] sm:$0xff]
    %v208 = vld [vmem:[#allocation2 + $0x480] sm:$0xff]
    %v209 = vld [vmem:[#allocation2 + $0x488] sm:$0xff]
    %v210 = vld [vmem:[#allocation2 + $0x490] sm:$0xff]
    %v211 = vld [vmem:[#allocation2 + $0x498] sm:$0xff]
    %v212 = vld [vmem:[#allocation2 + $0x4a0] sm:$0xff]
    %v213 = vld [vmem:[#allocation2 + $0x4a8] sm:$0xff]
    %v214 = vld [vmem:[#allocation2 + $0x4b0] sm:$0xff]
    %v215 = vld [vmem:[#allocation2 + $0x4b8] sm:$0xff]
    %v216 = vld [vmem:[#allocation2 + $0x4c0] sm:$0xff]
    %v217 = vld [vmem:[#allocation2 + $0x4c8] sm:$0xff]
    %v218 = vld [vmem:[#allocation2 + $0x4d0] sm:$0xff]
    %v219 = vld [vmem:[#allocation2 + $0x4d8] sm:$0xff]
    %v220 = vld [vmem:[#allocation2 + $0x4e0] sm:$0xff]
    %v221 = vld [vmem:[#allocation2 + $0x4e8] sm:$0xff]
    %v222 = vld [vmem:[#allocation2 + $0x4f0] sm:$0xff]
    %v223 = vld [vmem:[#allocation2 + $0x4f8] sm:$0xff]
    %v224 = vld [vmem:[#allocation2 + $0x500] sm:$0xff]
    %v225 = vld [vmem:[#allocation2 + $0x508] sm:$0xff]
    %v226 = vld [vmem:[#allocation2 + $0x510] sm:$0xff]
    %v227 = vld [vmem:[#allocation2 + $0x518] sm:$0xff]
    %v228 = vld [vmem:[#allocation2 + $0x520] sm:$0xff]
    %v229 = vld [vmem:[#allocation2 + $0x528] sm:$0xff]
    %v230 = vld [vmem:[#allocation2 + $0x530] sm:$0xff]
    %v231 = vld [vmem:[#allocation2 + $0x538] sm:$0xff]
    %v232 = vld [vmem:[#allocation2 + $0x540] sm:$0xff]
    %v233 = vld [vmem:[#allocation2 + $0x548] sm:$0xff]
    %v234 = vld [vmem:[#allocation2 + $0x550] sm:$0xff]
    %v235 = vld [vmem:[#allocation2 + $0x558] sm:$0xff]
    %v236 = vld [vmem:[#allocation2 + $0x560] sm:$0xff]
    %v237 = vld [vmem:[#allocation2 + $0x568] sm:$0xff]
    %v238 = vld [vmem:[#allocation2 + $0x570] sm:$0xff]
    %v239 = vld [vmem:[#allocation2 + $0x578] sm:$0xff]
    %v240 = vld [vmem:[#allocation2 + $0x580] sm:$0xff]
    %v241 = vld [vmem:[#allocation2 + $0x588] sm:$0xff]
    %v242 = vld [vmem:[#allocation2 + $0x590] sm:$0xff]
    %v243 = vld [vmem:[#allocation2 + $0x598] sm:$0xff]
    %v244 = vld [vmem:[#allocation2 + $0x5a0] sm:$0xff]
    %v245 = vld [vmem:[#allocation2 + $0x5a8] sm:$0xff]
    %v246 = vld [vmem:[#allocation2 + $0x5b0] sm:$0xff]
    %v247 = vld [vmem:[#allocation2 + $0x5b8] sm:$0xff]
    %v248 = vld [vmem:[#allocation2 + $0x5c0] sm:$0xff]
    %v249 = vld [vmem:[#allocation2 + $0x5c8] sm:$0xff]
    %v250 = vld [vmem:[#allocation2 + $0x5d0] sm:$0xff]
    %v251 = vld [vmem:[#allocation2 + $0x5d8] sm:$0xff]
    %v252 = vld [vmem:[#allocation2 + $0x5e0] sm:$0xff]
    %v253 = vld [vmem:[#allocation2 + $0x5e8] sm:$0xff]
    %v254 = vld [vmem:[#allocation2 + $0x5f0] sm:$0xff]
    %v255 = vld [vmem:[#allocation2 + $0x5f8] sm:$0xff]
    %v256 = vld [vmem:[#allocation2 + $0x600] sm:$0xff]
    %v257 = vld [vmem:[#allocation2 + $0x608] sm:$0xff]
    %v258 = vld [vmem:[#allocation2 + $0x610] sm:$0xff]
    %v259 = vld [vmem:[#allocation2 + $0x618] sm:$0xff]
    %v260 = vld [vmem:[#allocation2 + $0x620] sm:$0xff]
    %v261 = vld [vmem:[#allocation2 + $0x628] sm:$0xff]
    %v262 = vld [vmem:[#allocation2 + $0x630] sm:$0xff]
    %v263 = vld [vmem:[#allocation2 + $0x638] sm:$0xff]
    %v264 = vld [vmem:[#allocation2 + $0x640] sm:$0xff]
    %v265 = vld [vmem:[#allocation2 + $0x648] sm:$0xff]
    %v266 = vld [vmem:[#allocation2 + $0x650] sm:$0xff]
    %v267 = vld [vmem:[#allocation2 + $0x658] sm:$0xff]
    %v268 = vld [vmem:[#allocation2 + $0x660] sm:$0xff]
    %v269 = vld [vmem:[#allocation2 + $0x668] sm:$0xff]
    %v270 = vld [vmem:[#allocation2 + $0x670] sm:$0xff]
    %v271 = vld [vmem:[#allocation2 + $0x678] sm:$0xff]
    %v272 = vld [vmem:[#allocation2 + $0x680] sm:$0xff]
    %v273 = vld [vmem:[#allocation2 + $0x688] sm:$0xff]
    %v274 = vld [vmem:[#allocation2 + $0x690] sm:$0xff]
    %v275 = vld [vmem:[#allocation2 + $0x698] sm:$0xff]
    %v276 = vld [vmem:[#allocation2 + $0x6a0] sm:$0xff]
    %v277 = vld [vmem:[#allocation2 + $0x6a8] sm:$0xff]
    %v278 = vld [vmem:[#allocation2 + $0x6b0] sm:$0xff]
    %v279 = vld [vmem:[#allocation2 + $0x6b8] sm:$0xff]
    %v280 = vld [vmem:[#allocation2 + $0x6c0] sm:$0xff]
    %v281 = vld [vmem:[#allocation2 + $0x6c8] sm:$0xff]
    %v282 = vld [vmem:[#allocation2 + $0x6d0] sm:$0xff]
    %v283 = vld [vmem:[#allocation2 + $0x6d8] sm:$0xff]
    %v284 = vld [vmem:[#allocation2 + $0x6e0] sm:$0xff]
    %v285 = vld [vmem:[#allocation2 + $0x6e8] sm:$0xff]
    %v286 = vld [vmem:[#allocation2 + $0x6f0] sm:$0xff]
    %v287 = vld [vmem:[#allocation2 + $0x6f8] sm:$0xff]
    %v288 = vld [vmem:[#allocation2 + $0x700] sm:$0xff]
    %v289 = vld [vmem:[#allocation2 + $0x708] sm:$0xff]
    %v290 = vld [vmem:[#allocation2 + $0x710] sm:$0xff]
    %v291 = vld [vmem:[#allocation2 + $0x718] sm:$0xff]
    %v292 = vld [vmem:[#allocation2 + $0x720] sm:$0xff]
    %v293 = vld [vmem:[#allocation2 + $0x728] sm:$0xff]
    %v294 = vld [vmem:[#allocation2 + $0x730] sm:$0xff]
    %v295 = vld [vmem:[#allocation2 + $0x738] sm:$0xff]
    %v296 = vld [vmem:[#allocation2 + $0x740] sm:$0xff]
    %v297 = vld [vmem:[#allocation2 + $0x748] sm:$0xff]
    %v298 = vld [vmem:[#allocation2 + $0x750] sm:$0xff]
    %v299 = vld [vmem:[#allocation2 + $0x758] sm:$0xff]
    %v300 = vld [vmem:[#allocation2 + $0x760] sm:$0xff]
    %v301 = vld [vmem:[#allocation2 + $0x768] sm:$0xff]
    %v302 = vld [vmem:[#allocation2 + $0x770] sm:$0xff]
    %v303 = vld [vmem:[#allocation2 + $0x778] sm:$0xff]
    %v304 = vld [vmem:[#allocation2 + $0x780] sm:$0xff]
    %v305 = vld [vmem:[#allocation2 + $0x788] sm:$0xff]
    %v306 = vld [vmem:[#allocation2 + $0x790] sm:$0xff]
    %v307 = vld [vmem:[#allocation2 + $0x798] sm:$0xff]
    %v308 = vld [vmem:[#allocation2 + $0x7a0] sm:$0xff]
    %v309 = vld [vmem:[#allocation2 + $0x7a8] sm:$0xff]
    %v310 = vld [vmem:[#allocation2 + $0x7b0] sm:$0xff]
    %v311 = vld [vmem:[#allocation2 + $0x7b8] sm:$0xff]
    %v312 = vld [vmem:[#allocation2 + $0x7c0] sm:$0xff]
    %v313 = vld [vmem:[#allocation2 + $0x7c8] sm:$0xff]
    %v314 = vld [vmem:[#allocation2 + $0x7d0] sm:$0xff]
    %v315 = vld [vmem:[#allocation2 + $0x7d8] sm:$0xff]
    %v316 = vld [vmem:[#allocation2 + $0x7e0] sm:$0xff]
    %v317 = vld [vmem:[#allocation2 + $0x7e8] sm:$0xff]
    %v318 = vld [vmem:[#allocation2 + $0x7f0] sm:$0xff]
    %v319 = vld [vmem:[#allocation2 + $0x7f8] sm:$0xff]
    %v320 = vlaneseq
    %v321 = vshrl.u32 %v320, 7
    %v322 = vsub.s32 0, %v321
    %v323 = vrot.slane %v52, %v322
    %v324 = vlaneseq
    %v325 = vshrl.u32 %v324, 7
    %v326 = vsub.s32 0, %v325
    %v327 = vrot.slane %v53, %v326
    %v328 = vlaneseq
    %v329 = vshrl.u32 %v328, 7
    %v330 = vsub.s32 0, %v329
    %v331 = vrot.slane %v54, %v330
    %v332 = vlaneseq
    %v333 = vshrl.u32 %v332, 7
    %v334 = vsub.s32 0, %v333
    %v335 = vrot.slane %v55, %v334
    %v344 = vunpack.c.l.b16 %v56
    %v345 = vunpack.c.h.b16 %v56
    %v346 = vunpack.c.l.b16 %v57
    %v347 = vunpack.c.h.b16 %v57
    %v348 = vunpack.c.l.b16 %v58
    %v349 = vunpack.c.h.b16 %v58
    %v350 = vunpack.c.l.b16 %v59
    %v351 = vunpack.c.h.b16 %v59
    %v352 = vunpack.c.l.b16 %v60
    %v353 = vunpack.c.h.b16 %v60
    %v354 = vunpack.c.l.b16 %v61
    %v355 = vunpack.c.h.b16 %v61
    %v356 = vunpack.c.l.b16 %v62
    %v357 = vunpack.c.h.b16 %v62
    %v358 = vunpack.c.l.b16 %v63
    %v359 = vunpack.c.h.b16 %v63
    %v360 = vpack.c.b16 %v352, %v344
    %v361 = vpack.c.b16 %v353, %v345
    %v362 = vpack.c.b16 %v354, %v346
    %v363 = vpack.c.b16 %v355, %v347
    %v364 = vpack.c.b16 %v356, %v348
    %v365 = vpack.c.b16 %v357, %v349
    %v366 = vpack.c.b16 %v358, %v350
    %v367 = vpack.c.b16 %v359, %v351
    %v632 = vunpack.c.l.b16 %v64
    %v633 = vunpack.c.h.b16 %v64
    %v634 = vunpack.c.l.b16 %v65
    %v635 = vunpack.c.h.b16 %v65
    %v636 = vunpack.c.l.b16 %v66
    %v637 = vunpack.c.h.b16 %v66
    %v638 = vunpack.c.l.b16 %v67
    %v639 = vunpack.c.h.b16 %v67
    %v640 = vunpack.c.l.b16 %v68
    %v641 = vunpack.c.h.b16 %v68
    %v642 = vunpack.c.l.b16 %v69
    %v643 = vunpack.c.h.b16 %v69
    %v644 = vunpack.c.l.b16 %v70
    %v645 = vunpack.c.h.b16 %v70
    %v646 = vunpack.c.l.b16 %v71
    %v647 = vunpack.c.h.b16 %v71
    %v648 = vunpack.c.l.b16 %v72
    %v649 = vunpack.c.h.b16 %v72
    %v650 = vunpack.c.l.b16 %v73
    %v651 = vunpack.c.h.b16 %v73
    %v652 = vunpack.c.l.b16 %v74
    %v653 = vunpack.c.h.b16 %v74
    %v654 = vunpack.c.l.b16 %v75
    %v655 = vunpack.c.h.b16 %v75
    %v656 = vunpack.c.l.b16 %v76
    %v657 = vunpack.c.h.b16 %v76
    %v658 = vunpack.c.l.b16 %v77
    %v659 = vunpack.c.h.b16 %v77
    %v660 = vunpack.c.l.b16 %v78
    %v661 = vunpack.c.h.b16 %v78
    %v662 = vunpack.c.l.b16 %v79
    %v663 = vunpack.c.h.b16 %v79
    %v664 = vunpack.c.l.b16 %v80
    %v665 = vunpack.c.h.b16 %v80
    %v666 = vunpack.c.l.b16 %v81
    %v667 = vunpack.c.h.b16 %v81
    %v668 = vunpack.c.l.b16 %v82
    %v669 = vunpack.c.h.b16 %v82
    %v670 = vunpack.c.l.b16 %v83
    %v671 = vunpack.c.h.b16 %v83
    %v672 = vunpack.c.l.b16 %v84
    %v673 = vunpack.c.h.b16 %v84
    %v674 = vunpack.c.l.b16 %v85
    %v675 = vunpack.c.h.b16 %v85
    %v676 = vunpack.c.l.b16 %v86
    %v677 = vunpack.c.h.b16 %v86
    %v678 = vunpack.c.l.b16 %v87
    %v679 = vunpack.c.h.b16 %v87
    %v680 = vunpack.c.l.b16 %v88
    %v681 = vunpack.c.h.b16 %v88
    %v682 = vunpack.c.l.b16 %v89
    %v683 = vunpack.c.h.b16 %v89
    %v684 = vunpack.c.l.b16 %v90
    %v685 = vunpack.c.h.b16 %v90
    %v686 = vunpack.c.l.b16 %v91
    %v687 = vunpack.c.h.b16 %v91
    %v688 = vunpack.c.l.b16 %v92
    %v689 = vunpack.c.h.b16 %v92
    %v690 = vunpack.c.l.b16 %v93
    %v691 = vunpack.c.h.b16 %v93
    %v692 = vunpack.c.l.b16 %v94
    %v693 = vunpack.c.h.b16 %v94
    %v694 = vunpack.c.l.b16 %v95
    %v695 = vunpack.c.h.b16 %v95
    %v696 = vunpack.c.l.b16 %v96
    %v697 = vunpack.c.h.b16 %v96
    %v698 = vunpack.c.l.b16 %v97
    %v699 = vunpack.c.h.b16 %v97
    %v700 = vunpack.c.l.b16 %v98
    %v701 = vunpack.c.h.b16 %v98
    %v702 = vunpack.c.l.b16 %v99
    %v703 = vunpack.c.h.b16 %v99
    %v704 = vunpack.c.l.b16 %v100
    %v705 = vunpack.c.h.b16 %v100
    %v706 = vunpack.c.l.b16 %v101
    %v707 = vunpack.c.h.b16 %v101
    %v708 = vunpack.c.l.b16 %v102
    %v709 = vunpack.c.h.b16 %v102
    %v710 = vunpack.c.l.b16 %v103
    %v711 = vunpack.c.h.b16 %v103
    %v712 = vunpack.c.l.b16 %v104
    %v713 = vunpack.c.h.b16 %v104
    %v714 = vunpack.c.l.b16 %v105
    %v715 = vunpack.c.h.b16 %v105
    %v716 = vunpack.c.l.b16 %v106
    %v717 = vunpack.c.h.b16 %v106
    %v718 = vunpack.c.l.b16 %v107
    %v719 = vunpack.c.h.b16 %v107
    %v720 = vunpack.c.l.b16 %v108
    %v721 = vunpack.c.h.b16 %v108
    %v722 = vunpack.c.l.b16 %v109
    %v723 = vunpack.c.h.b16 %v109
    %v724 = vunpack.c.l.b16 %v110
    %v725 = vunpack.c.h.b16 %v110
    %v726 = vunpack.c.l.b16 %v111
    %v727 = vunpack.c.h.b16 %v111
    %v728 = vunpack.c.l.b16 %v112
    %v729 = vunpack.c.h.b16 %v112
    %v730 = vunpack.c.l.b16 %v113
    %v731 = vunpack.c.h.b16 %v113
    %v732 = vunpack.c.l.b16 %v114
    %v733 = vunpack.c.h.b16 %v114
    %v734 = vunpack.c.l.b16 %v115
    %v735 = vunpack.c.h.b16 %v115
    %v736 = vunpack.c.l.b16 %v116
    %v737 = vunpack.c.h.b16 %v116
    %v738 = vunpack.c.l.b16 %v117
    %v739 = vunpack.c.h.b16 %v117
    %v740 = vunpack.c.l.b16 %v118
    %v741 = vunpack.c.h.b16 %v118
    %v742 = vunpack.c.l.b16 %v119
    %v743 = vunpack.c.h.b16 %v119
    %v744 = vunpack.c.l.b16 %v120
    %v745 = vunpack.c.h.b16 %v120
    %v746 = vunpack.c.l.b16 %v121
    %v747 = vunpack.c.h.b16 %v121
    %v748 = vunpack.c.l.b16 %v122
    %v749 = vunpack.c.h.b16 %v122
    %v750 = vunpack.c.l.b16 %v123
    %v751 = vunpack.c.h.b16 %v123
    %v752 = vunpack.c.l.b16 %v124
    %v753 = vunpack.c.h.b16 %v124
    %v754 = vunpack.c.l.b16 %v125
    %v755 = vunpack.c.h.b16 %v125
    %v756 = vunpack.c.l.b16 %v126
    %v757 = vunpack.c.h.b16 %v126
    %v758 = vunpack.c.l.b16 %v127
    %v759 = vunpack.c.h.b16 %v127
    %v760 = vunpack.c.l.b16 %v128
    %v761 = vunpack.c.h.b16 %v128
    %v762 = vunpack.c.l.b16 %v129
    %v763 = vunpack.c.h.b16 %v129
    %v764 = vunpack.c.l.b16 %v130
    %v765 = vunpack.c.h.b16 %v130
    %v766 = vunpack.c.l.b16 %v131
    %v767 = vunpack.c.h.b16 %v131
    %v768 = vunpack.c.l.b16 %v132
    %v769 = vunpack.c.h.b16 %v132
    %v770 = vunpack.c.l.b16 %v133
    %v771 = vunpack.c.h.b16 %v133
    %v772 = vunpack.c.l.b16 %v134
    %v773 = vunpack.c.h.b16 %v134
    %v774 = vunpack.c.l.b16 %v135
    %v775 = vunpack.c.h.b16 %v135
    %v776 = vunpack.c.l.b16 %v136
    %v777 = vunpack.c.h.b16 %v136
    %v778 = vunpack.c.l.b16 %v137
    %v779 = vunpack.c.h.b16 %v137
    %v780 = vunpack.c.l.b16 %v138
    %v781 = vunpack.c.h.b16 %v138
    %v782 = vunpack.c.l.b16 %v139
    %v783 = vunpack.c.h.b16 %v139
    %v784 = vunpack.c.l.b16 %v140
    %v785 = vunpack.c.h.b16 %v140
    %v786 = vunpack.c.l.b16 %v141
    %v787 = vunpack.c.h.b16 %v141
    %v788 = vunpack.c.l.b16 %v142
    %v789 = vunpack.c.h.b16 %v142
    %v790 = vunpack.c.l.b16 %v143
    %v791 = vunpack.c.h.b16 %v143
    %v792 = vunpack.c.l.b16 %v144
    %v793 = vunpack.c.h.b16 %v144
    %v794 = vunpack.c.l.b16 %v145
    %v795 = vunpack.c.h.b16 %v145
    %v796 = vunpack.c.l.b16 %v146
    %v797 = vunpack.c.h.b16 %v146
    %v798 = vunpack.c.l.b16 %v147
    %v799 = vunpack.c.h.b16 %v147
    %v800 = vunpack.c.l.b16 %v148
    %v801 = vunpack.c.h.b16 %v148
    %v802 = vunpack.c.l.b16 %v149
    %v803 = vunpack.c.h.b16 %v149
    %v804 = vunpack.c.l.b16 %v150
    %v805 = vunpack.c.h.b16 %v150
    %v806 = vunpack.c.l.b16 %v151
    %v807 = vunpack.c.h.b16 %v151
    %v808 = vunpack.c.l.b16 %v152
    %v809 = vunpack.c.h.b16 %v152
    %v810 = vunpack.c.l.b16 %v153
    %v811 = vunpack.c.h.b16 %v153
    %v812 = vunpack.c.l.b16 %v154
    %v813 = vunpack.c.h.b16 %v154
    %v814 = vunpack.c.l.b16 %v155
    %v815 = vunpack.c.h.b16 %v155
    %v816 = vunpack.c.l.b16 %v156
    %v817 = vunpack.c.h.b16 %v156
    %v818 = vunpack.c.l.b16 %v157
    %v819 = vunpack.c.h.b16 %v157
    %v820 = vunpack.c.l.b16 %v158
    %v821 = vunpack.c.h.b16 %v158
    %v822 = vunpack.c.l.b16 %v159
    %v823 = vunpack.c.h.b16 %v159
    %v824 = vunpack.c.l.b16 %v160
    %v825 = vunpack.c.h.b16 %v160
    %v826 = vunpack.c.l.b16 %v161
    %v827 = vunpack.c.h.b16 %v161
    %v828 = vunpack.c.l.b16 %v162
    %v829 = vunpack.c.h.b16 %v162
    %v830 = vunpack.c.l.b16 %v163
    %v831 = vunpack.c.h.b16 %v163
    %v832 = vunpack.c.l.b16 %v164
    %v833 = vunpack.c.h.b16 %v164
    %v834 = vunpack.c.l.b16 %v165
    %v835 = vunpack.c.h.b16 %v165
    %v836 = vunpack.c.l.b16 %v166
    %v837 = vunpack.c.h.b16 %v166
    %v838 = vunpack.c.l.b16 %v167
    %v839 = vunpack.c.h.b16 %v167
    %v840 = vunpack.c.l.b16 %v168
    %v841 = vunpack.c.h.b16 %v168
    %v842 = vunpack.c.l.b16 %v169
    %v843 = vunpack.c.h.b16 %v169
    %v844 = vunpack.c.l.b16 %v170
    %v845 = vunpack.c.h.b16 %v170
    %v846 = vunpack.c.l.b16 %v171
    %v847 = vunpack.c.h.b16 %v171
    %v848 = vunpack.c.l.b16 %v172
    %v849 = vunpack.c.h.b16 %v172
    %v850 = vunpack.c.l.b16 %v173
    %v851 = vunpack.c.h.b16 %v173
    %v852 = vunpack.c.l.b16 %v174
    %v853 = vunpack.c.h.b16 %v174
    %v854 = vunpack.c.l.b16 %v175
    %v855 = vunpack.c.h.b16 %v175
    %v856 = vunpack.c.l.b16 %v176
    %v857 = vunpack.c.h.b16 %v176
    %v858 = vunpack.c.l.b16 %v177
    %v859 = vunpack.c.h.b16 %v177
    %v860 = vunpack.c.l.b16 %v178
    %v861 = vunpack.c.h.b16 %v178
    %v862 = vunpack.c.l.b16 %v179
    %v863 = vunpack.c.h.b16 %v179
    %v864 = vunpack.c.l.b16 %v180
    %v865 = vunpack.c.h.b16 %v180
    %v866 = vunpack.c.l.b16 %v181
    %v867 = vunpack.c.h.b16 %v181
    %v868 = vunpack.c.l.b16 %v182
    %v869 = vunpack.c.h.b16 %v182
    %v870 = vunpack.c.l.b16 %v183
    %v871 = vunpack.c.h.b16 %v183
    %v872 = vunpack.c.l.b16 %v184
    %v873 = vunpack.c.h.b16 %v184
    %v874 = vunpack.c.l.b16 %v185
    %v875 = vunpack.c.h.b16 %v185
    %v876 = vunpack.c.l.b16 %v186
    %v877 = vunpack.c.h.b16 %v186
    %v878 = vunpack.c.l.b16 %v187
    %v879 = vunpack.c.h.b16 %v187
    %v880 = vunpack.c.l.b16 %v188
    %v881 = vunpack.c.h.b16 %v188
    %v882 = vunpack.c.l.b16 %v189
    %v883 = vunpack.c.h.b16 %v189
    %v884 = vunpack.c.l.b16 %v190
    %v885 = vunpack.c.h.b16 %v190
    %v886 = vunpack.c.l.b16 %v191
    %v887 = vunpack.c.h.b16 %v191
    %v888 = vunpack.c.l.b16 %v192
    %v889 = vunpack.c.h.b16 %v192
    %v890 = vunpack.c.l.b16 %v193
    %v891 = vunpack.c.h.b16 %v193
    %v892 = vunpack.c.l.b16 %v194
    %v893 = vunpack.c.h.b16 %v194
    %v894 = vunpack.c.l.b16 %v195
    %v895 = vunpack.c.h.b16 %v195
    %v896 = vunpack.c.l.b16 %v196
    %v897 = vunpack.c.h.b16 %v196
    %v898 = vunpack.c.l.b16 %v197
    %v899 = vunpack.c.h.b16 %v197
    %v900 = vunpack.c.l.b16 %v198
    %v901 = vunpack.c.h.b16 %v198
    %v902 = vunpack.c.l.b16 %v199
    %v903 = vunpack.c.h.b16 %v199
    %v904 = vunpack.c.l.b16 %v200
    %v905 = vunpack.c.h.b16 %v200
    %v906 = vunpack.c.l.b16 %v201
    %v907 = vunpack.c.h.b16 %v201
    %v908 = vunpack.c.l.b16 %v202
    %v909 = vunpack.c.h.b16 %v202
    %v910 = vunpack.c.l.b16 %v203
    %v911 = vunpack.c.h.b16 %v203
    %v912 = vunpack.c.l.b16 %v204
    %v913 = vunpack.c.h.b16 %v204
    %v914 = vunpack.c.l.b16 %v205
    %v915 = vunpack.c.h.b16 %v205
    %v916 = vunpack.c.l.b16 %v206
    %v917 = vunpack.c.h.b16 %v206
    %v918 = vunpack.c.l.b16 %v207
    %v919 = vunpack.c.h.b16 %v207
    %v920 = vunpack.c.l.b16 %v208
    %v921 = vunpack.c.h.b16 %v208
    %v922 = vunpack.c.l.b16 %v209
    %v923 = vunpack.c.h.b16 %v209
    %v924 = vunpack.c.l.b16 %v210
    %v925 = vunpack.c.h.b16 %v210
    %v926 = vunpack.c.l.b16 %v211
    %v927 = vunpack.c.h.b16 %v211
    %v928 = vunpack.c.l.b16 %v212
    %v929 = vunpack.c.h.b16 %v212
    %v930 = vunpack.c.l.b16 %v213
    %v931 = vunpack.c.h.b16 %v213
    %v932 = vunpack.c.l.b16 %v214
    %v933 = vunpack.c.h.b16 %v214
    %v934 = vunpack.c.l.b16 %v215
    %v935 = vunpack.c.h.b16 %v215
    %v936 = vunpack.c.l.b16 %v216
    %v937 = vunpack.c.h.b16 %v216
    %v938 = vunpack.c.l.b16 %v217
    %v939 = vunpack.c.h.b16 %v217
    %v940 = vunpack.c.l.b16 %v218
    %v941 = vunpack.c.h.b16 %v218
    %v942 = vunpack.c.l.b16 %v219
    %v943 = vunpack.c.h.b16 %v219
    %v944 = vunpack.c.l.b16 %v220
    %v945 = vunpack.c.h.b16 %v220
    %v946 = vunpack.c.l.b16 %v221
    %v947 = vunpack.c.h.b16 %v221
    %v948 = vunpack.c.l.b16 %v222
    %v949 = vunpack.c.h.b16 %v222
    %v950 = vunpack.c.l.b16 %v223
    %v951 = vunpack.c.h.b16 %v223
    %v952 = vunpack.c.l.b16 %v224
    %v953 = vunpack.c.h.b16 %v224
    %v954 = vunpack.c.l.b16 %v225
    %v955 = vunpack.c.h.b16 %v225
    %v956 = vunpack.c.l.b16 %v226
    %v957 = vunpack.c.h.b16 %v226
    %v958 = vunpack.c.l.b16 %v227
    %v959 = vunpack.c.h.b16 %v227
    %v960 = vunpack.c.l.b16 %v228
    %v961 = vunpack.c.h.b16 %v228
    %v962 = vunpack.c.l.b16 %v229
    %v963 = vunpack.c.h.b16 %v229
    %v964 = vunpack.c.l.b16 %v230
    %v965 = vunpack.c.h.b16 %v230
    %v966 = vunpack.c.l.b16 %v231
    %v967 = vunpack.c.h.b16 %v231
    %v968 = vunpack.c.l.b16 %v232
    %v969 = vunpack.c.h.b16 %v232
    %v970 = vunpack.c.l.b16 %v233
    %v971 = vunpack.c.h.b16 %v233
    %v972 = vunpack.c.l.b16 %v234
    %v973 = vunpack.c.h.b16 %v234
    %v974 = vunpack.c.l.b16 %v235
    %v975 = vunpack.c.h.b16 %v235
    %v976 = vunpack.c.l.b16 %v236
    %v977 = vunpack.c.h.b16 %v236
    %v978 = vunpack.c.l.b16 %v237
    %v979 = vunpack.c.h.b16 %v237
    %v980 = vunpack.c.l.b16 %v238
    %v981 = vunpack.c.h.b16 %v238
    %v982 = vunpack.c.l.b16 %v239
    %v983 = vunpack.c.h.b16 %v239
    %v984 = vunpack.c.l.b16 %v240
    %v985 = vunpack.c.h.b16 %v240
    %v986 = vunpack.c.l.b16 %v241
    %v987 = vunpack.c.h.b16 %v241
    %v988 = vunpack.c.l.b16 %v242
    %v989 = vunpack.c.h.b16 %v242
    %v990 = vunpack.c.l.b16 %v243
    %v991 = vunpack.c.h.b16 %v243
    %v992 = vunpack.c.l.b16 %v244
    %v993 = vunpack.c.h.b16 %v244
    %v994 = vunpack.c.l.b16 %v245
    %v995 = vunpack.c.h.b16 %v245
    %v996 = vunpack.c.l.b16 %v246
    %v997 = vunpack.c.h.b16 %v246
    %v998 = vunpack.c.l.b16 %v247
    %v999 = vunpack.c.h.b16 %v247
    %v1000 = vunpack.c.l.b16 %v248
    %v1001 = vunpack.c.h.b16 %v248
    %v1002 = vunpack.c.l.b16 %v249
    %v1003 = vunpack.c.h.b16 %v249
    %v1004 = vunpack.c.l.b16 %v250
    %v1005 = vunpack.c.h.b16 %v250
    %v1006 = vunpack.c.l.b16 %v251
    %v1007 = vunpack.c.h.b16 %v251
    %v1008 = vunpack.c.l.b16 %v252
    %v1009 = vunpack.c.h.b16 %v252
    %v1010 = vunpack.c.l.b16 %v253
    %v1011 = vunpack.c.h.b16 %v253
    %v1012 = vunpack.c.l.b16 %v254
    %v1013 = vunpack.c.h.b16 %v254
    %v1014 = vunpack.c.l.b16 %v255
    %v1015 = vunpack.c.h.b16 %v255
    %v1016 = vunpack.c.l.b16 %v256
    %v1017 = vunpack.c.h.b16 %v256
    %v1018 = vunpack.c.l.b16 %v257
    %v1019 = vunpack.c.h.b16 %v257
    %v1020 = vunpack.c.l.b16 %v258
    %v1021 = vunpack.c.h.b16 %v258
    %v1022 = vunpack.c.l.b16 %v259
    %v1023 = vunpack.c.h.b16 %v259
    %v1024 = vunpack.c.l.b16 %v260
    %v1025 = vunpack.c.h.b16 %v260
    %v1026 = vunpack.c.l.b16 %v261
    %v1027 = vunpack.c.h.b16 %v261
    %v1028 = vunpack.c.l.b16 %v262
    %v1029 = vunpack.c.h.b16 %v262
    %v1030 = vunpack.c.l.b16 %v263
    %v1031 = vunpack.c.h.b16 %v263
    %v1032 = vunpack.c.l.b16 %v264
    %v1033 = vunpack.c.h.b16 %v264
    %v1034 = vunpack.c.l.b16 %v265
    %v1035 = vunpack.c.h.b16 %v265
    %v1036 = vunpack.c.l.b16 %v266
    %v1037 = vunpack.c.h.b16 %v266
    %v1038 = vunpack.c.l.b16 %v267
    %v1039 = vunpack.c.h.b16 %v267
    %v1040 = vunpack.c.l.b16 %v268
    %v1041 = vunpack.c.h.b16 %v268
    %v1042 = vunpack.c.l.b16 %v269
    %v1043 = vunpack.c.h.b16 %v269
    %v1044 = vunpack.c.l.b16 %v270
    %v1045 = vunpack.c.h.b16 %v270
    %v1046 = vunpack.c.l.b16 %v271
    %v1047 = vunpack.c.h.b16 %v271
    %v1048 = vunpack.c.l.b16 %v272
    %v1049 = vunpack.c.h.b16 %v272
    %v1050 = vunpack.c.l.b16 %v273
    %v1051 = vunpack.c.h.b16 %v273
    %v1052 = vunpack.c.l.b16 %v274
    %v1053 = vunpack.c.h.b16 %v274
    %v1054 = vunpack.c.l.b16 %v275
    %v1055 = vunpack.c.h.b16 %v275
    %v1056 = vunpack.c.l.b16 %v276
    %v1057 = vunpack.c.h.b16 %v276
    %v1058 = vunpack.c.l.b16 %v277
    %v1059 = vunpack.c.h.b16 %v277
    %v1060 = vunpack.c.l.b16 %v278
    %v1061 = vunpack.c.h.b16 %v278
    %v1062 = vunpack.c.l.b16 %v279
    %v1063 = vunpack.c.h.b16 %v279
    %v1064 = vunpack.c.l.b16 %v280
    %v1065 = vunpack.c.h.b16 %v280
    %v1066 = vunpack.c.l.b16 %v281
    %v1067 = vunpack.c.h.b16 %v281
    %v1068 = vunpack.c.l.b16 %v282
    %v1069 = vunpack.c.h.b16 %v282
    %v1070 = vunpack.c.l.b16 %v283
    %v1071 = vunpack.c.h.b16 %v283
    %v1072 = vunpack.c.l.b16 %v284
    %v1073 = vunpack.c.h.b16 %v284
    %v1074 = vunpack.c.l.b16 %v285
    %v1075 = vunpack.c.h.b16 %v285
    %v1076 = vunpack.c.l.b16 %v286
    %v1077 = vunpack.c.h.b16 %v286
    %v1078 = vunpack.c.l.b16 %v287
    %v1079 = vunpack.c.h.b16 %v287
    %v1080 = vunpack.c.l.b16 %v288
    %v1081 = vunpack.c.h.b16 %v288
    %v1082 = vunpack.c.l.b16 %v289
    %v1083 = vunpack.c.h.b16 %v289
    %v1084 = vunpack.c.l.b16 %v290
    %v1085 = vunpack.c.h.b16 %v290
    %v1086 = vunpack.c.l.b16 %v291
    %v1087 = vunpack.c.h.b16 %v291
    %v1088 = vunpack.c.l.b16 %v292
    %v1089 = vunpack.c.h.b16 %v292
    %v1090 = vunpack.c.l.b16 %v293
    %v1091 = vunpack.c.h.b16 %v293
    %v1092 = vunpack.c.l.b16 %v294
    %v1093 = vunpack.c.h.b16 %v294
    %v1094 = vunpack.c.l.b16 %v295
    %v1095 = vunpack.c.h.b16 %v295
    %v1096 = vunpack.c.l.b16 %v296
    %v1097 = vunpack.c.h.b16 %v296
    %v1098 = vunpack.c.l.b16 %v297
    %v1099 = vunpack.c.h.b16 %v297
    %v1100 = vunpack.c.l.b16 %v298
    %v1101 = vunpack.c.h.b16 %v298
    %v1102 = vunpack.c.l.b16 %v299
    %v1103 = vunpack.c.h.b16 %v299
    %v1104 = vunpack.c.l.b16 %v300
    %v1105 = vunpack.c.h.b16 %v300
    %v1106 = vunpack.c.l.b16 %v301
    %v1107 = vunpack.c.h.b16 %v301
    %v1108 = vunpack.c.l.b16 %v302
    %v1109 = vunpack.c.h.b16 %v302
    %v1110 = vunpack.c.l.b16 %v303
    %v1111 = vunpack.c.h.b16 %v303
    %v1112 = vunpack.c.l.b16 %v304
    %v1113 = vunpack.c.h.b16 %v304
    %v1114 = vunpack.c.l.b16 %v305
    %v1115 = vunpack.c.h.b16 %v305
    %v1116 = vunpack.c.l.b16 %v306
    %v1117 = vunpack.c.h.b16 %v306
    %v1118 = vunpack.c.l.b16 %v307
    %v1119 = vunpack.c.h.b16 %v307
    %v1120 = vunpack.c.l.b16 %v308
    %v1121 = vunpack.c.h.b16 %v308
    %v1122 = vunpack.c.l.b16 %v309
    %v1123 = vunpack.c.h.b16 %v309
    %v1124 = vunpack.c.l.b16 %v310
    %v1125 = vunpack.c.h.b16 %v310
    %v1126 = vunpack.c.l.b16 %v311
    %v1127 = vunpack.c.h.b16 %v311
    %v1128 = vunpack.c.l.b16 %v312
    %v1129 = vunpack.c.h.b16 %v312
    %v1130 = vunpack.c.l.b16 %v313
    %v1131 = vunpack.c.h.b16 %v313
    %v1132 = vunpack.c.l.b16 %v314
    %v1133 = vunpack.c.h.b16 %v314
    %v1134 = vunpack.c.l.b16 %v315
    %v1135 = vunpack.c.h.b16 %v315
    %v1136 = vunpack.c.l.b16 %v316
    %v1137 = vunpack.c.h.b16 %v316
    %v1138 = vunpack.c.l.b16 %v317
    %v1139 = vunpack.c.h.b16 %v317
    %v1140 = vunpack.c.l.b16 %v318
    %v1141 = vunpack.c.h.b16 %v318
    %v1142 = vunpack.c.l.b16 %v319
    %v1143 = vunpack.c.h.b16 %v319
    %v1144 = vpack.c.b16 %v636, %v632
    %v1145 = vpack.c.b16 %v637, %v633
    %v1146 = vpack.c.b16 %v638, %v634
    %v1147 = vpack.c.b16 %v639, %v635
    %v1148 = vpack.c.b16 %v644, %v640
    %v1149 = vpack.c.b16 %v645, %v641
    %v1150 = vpack.c.b16 %v646, %v642
    %v1151 = vpack.c.b16 %v647, %v643
    %v1152 = vpack.c.b16 %v652, %v648
    %v1153 = vpack.c.b16 %v653, %v649
    %v1154 = vpack.c.b16 %v654, %v650
    %v1155 = vpack.c.b16 %v655, %v651
    %v1156 = vpack.c.b16 %v660, %v656
    %v1157 = vpack.c.b16 %v661, %v657
    %v1158 = vpack.c.b16 %v662, %v658
    %v1159 = vpack.c.b16 %v663, %v659
    %v1160 = vpack.c.b16 %v668, %v664
    %v1161 = vpack.c.b16 %v669, %v665
    %v1162 = vpack.c.b16 %v670, %v666
    %v1163 = vpack.c.b16 %v671, %v667
    %v1164 = vpack.c.b16 %v676, %v672
    %v1165 = vpack.c.b16 %v677, %v673
    %v1166 = vpack.c.b16 %v678, %v674
    %v1167 = vpack.c.b16 %v679, %v675
    %v1168 = vpack.c.b16 %v684, %v680
    %v1169 = vpack.c.b16 %v685, %v681
    %v1170 = vpack.c.b16 %v686, %v682
    %v1171 = vpack.c.b16 %v687, %v683
    %v1172 = vpack.c.b16 %v692, %v688
    %v1173 = vpack.c.b16 %v693, %v689
    %v1174 = vpack.c.b16 %v694, %v690
    %v1175 = vpack.c.b16 %v695, %v691
    %v1176 = vpack.c.b16 %v700, %v696
    %v1177 = vpack.c.b16 %v701, %v697
    %v1178 = vpack.c.b16 %v702, %v698
    %v1179 = vpack.c.b16 %v703, %v699
    %v1180 = vpack.c.b16 %v708, %v704
    %v1181 = vpack.c.b16 %v709, %v705
    %v1182 = vpack.c.b16 %v710, %v706
    %v1183 = vpack.c.b16 %v711, %v707
    %v1184 = vpack.c.b16 %v716, %v712
    %v1185 = vpack.c.b16 %v717, %v713
    %v1186 = vpack.c.b16 %v718, %v714
    %v1187 = vpack.c.b16 %v719, %v715
    %v1188 = vpack.c.b16 %v724, %v720
    %v1189 = vpack.c.b16 %v725, %v721
    %v1190 = vpack.c.b16 %v726, %v722
    %v1191 = vpack.c.b16 %v727, %v723
    %v1192 = vpack.c.b16 %v732, %v728
    %v1193 = vpack.c.b16 %v733, %v729
    %v1194 = vpack.c.b16 %v734, %v730
    %v1195 = vpack.c.b16 %v735, %v731
    %v1196 = vpack.c.b16 %v740, %v736
    %v1197 = vpack.c.b16 %v741, %v737
    %v1198 = vpack.c.b16 %v742, %v738
    %v1199 = vpack.c.b16 %v743, %v739
    %v1200 = vpack.c.b16 %v748, %v744
    %v1201 = vpack.c.b16 %v749, %v745
    %v1202 = vpack.c.b16 %v750, %v746
    %v1203 = vpack.c.b16 %v751, %v747
    %v1204 = vpack.c.b16 %v756, %v752
    %v1205 = vpack.c.b16 %v757, %v753
    %v1206 = vpack.c.b16 %v758, %v754
    %v1207 = vpack.c.b16 %v759, %v755
    %v1208 = vpack.c.b16 %v764, %v760
    %v1209 = vpack.c.b16 %v765, %v761
    %v1210 = vpack.c.b16 %v766, %v762
    %v1211 = vpack.c.b16 %v767, %v763
    %v1212 = vpack.c.b16 %v772, %v768
    %v1213 = vpack.c.b16 %v773, %v769
    %v1214 = vpack.c.b16 %v774, %v770
    %v1215 = vpack.c.b16 %v775, %v771
    %v1216 = vpack.c.b16 %v780, %v776
    %v1217 = vpack.c.b16 %v781, %v777
    %v1218 = vpack.c.b16 %v782, %v778
    %v1219 = vpack.c.b16 %v783, %v779
    %v1220 = vpack.c.b16 %v788, %v784
    %v1221 = vpack.c.b16 %v789, %v785
    %v1222 = vpack.c.b16 %v790, %v786
    %v1223 = vpack.c.b16 %v791, %v787
    %v1224 = vpack.c.b16 %v796, %v792
    %v1225 = vpack.c.b16 %v797, %v793
    %v1226 = vpack.c.b16 %v798, %v794
    %v1227 = vpack.c.b16 %v799, %v795
    %v1228 = vpack.c.b16 %v804, %v800
    %v1229 = vpack.c.b16 %v805, %v801
    %v1230 = vpack.c.b16 %v806, %v802
    %v1231 = vpack.c.b16 %v807, %v803
    %v1232 = vpack.c.b16 %v812, %v808
    %v1233 = vpack.c.b16 %v813, %v809
    %v1234 = vpack.c.b16 %v814, %v810
    %v1235 = vpack.c.b16 %v815, %v811
    %v1236 = vpack.c.b16 %v820, %v816
    %v1237 = vpack.c.b16 %v821, %v817
    %v1238 = vpack.c.b16 %v822, %v818
    %v1239 = vpack.c.b16 %v823, %v819
    %v1240 = vpack.c.b16 %v828, %v824
    %v1241 = vpack.c.b16 %v829, %v825
    %v1242 = vpack.c.b16 %v830, %v826
    %v1243 = vpack.c.b16 %v831, %v827
    %v1244 = vpack.c.b16 %v836, %v832
    %v1245 = vpack.c.b16 %v837, %v833
    %v1246 = vpack.c.b16 %v838, %v834
    %v1247 = vpack.c.b16 %v839, %v835
    %v1248 = vpack.c.b16 %v844, %v840
    %v1249 = vpack.c.b16 %v845, %v841
    %v1250 = vpack.c.b16 %v846, %v842
    %v1251 = vpack.c.b16 %v847, %v843
    %v1252 = vpack.c.b16 %v852, %v848
    %v1253 = vpack.c.b16 %v853, %v849
    %v1254 = vpack.c.b16 %v854, %v850
    %v1255 = vpack.c.b16 %v855, %v851
    %v1256 = vpack.c.b16 %v860, %v856
    %v1257 = vpack.c.b16 %v861, %v857
    %v1258 = vpack.c.b16 %v862, %v858
    %v1259 = vpack.c.b16 %v863, %v859
    %v1260 = vpack.c.b16 %v868, %v864
    %v1261 = vpack.c.b16 %v869, %v865
    %v1262 = vpack.c.b16 %v870, %v866
    %v1263 = vpack.c.b16 %v871, %v867
    %v1264 = vpack.c.b16 %v876, %v872
    %v1265 = vpack.c.b16 %v877, %v873
    %v1266 = vpack.c.b16 %v878, %v874
    %v1267 = vpack.c.b16 %v879, %v875
    %v1268 = vpack.c.b16 %v884, %v880
    %v1269 = vpack.c.b16 %v885, %v881
    %v1270 = vpack.c.b16 %v886, %v882
    %v1271 = vpack.c.b16 %v887, %v883
    %v1272 = vpack.c.b16 %v892, %v888
    %v1273 = vpack.c.b16 %v893, %v889
    %v1274 = vpack.c.b16 %v894, %v890
    %v1275 = vpack.c.b16 %v895, %v891
    %v1276 = vpack.c.b16 %v900, %v896
    %v1277 = vpack.c.b16 %v901, %v897
    %v1278 = vpack.c.b16 %v902, %v898
    %v1279 = vpack.c.b16 %v903, %v899
    %v1280 = vpack.c.b16 %v908, %v904
    %v1281 = vpack.c.b16 %v909, %v905
    %v1282 = vpack.c.b16 %v910, %v906
    %v1283 = vpack.c.b16 %v911, %v907
    %v1284 = vpack.c.b16 %v916, %v912
    %v1285 = vpack.c.b16 %v917, %v913
    %v1286 = vpack.c.b16 %v918, %v914
    %v1287 = vpack.c.b16 %v919, %v915
    %v1288 = vpack.c.b16 %v924, %v920
    %v1289 = vpack.c.b16 %v925, %v921
    %v1290 = vpack.c.b16 %v926, %v922
    %v1291 = vpack.c.b16 %v927, %v923
    %v1292 = vpack.c.b16 %v932, %v928
    %v1293 = vpack.c.b16 %v933, %v929
    %v1294 = vpack.c.b16 %v934, %v930
    %v1295 = vpack.c.b16 %v935, %v931
    %v1296 = vpack.c.b16 %v940, %v936
    %v1297 = vpack.c.b16 %v941, %v937
    %v1298 = vpack.c.b16 %v942, %v938
    %v1299 = vpack.c.b16 %v943, %v939
    %v1300 = vpack.c.b16 %v948, %v944
    %v1301 = vpack.c.b16 %v949, %v945
    %v1302 = vpack.c.b16 %v950, %v946
    %v1303 = vpack.c.b16 %v951, %v947
    %v1304 = vpack.c.b16 %v956, %v952
    %v1305 = vpack.c.b16 %v957, %v953
    %v1306 = vpack.c.b16 %v958, %v954
    %v1307 = vpack.c.b16 %v959, %v955
    %v1308 = vpack.c.b16 %v964, %v960
    %v1309 = vpack.c.b16 %v965, %v961
    %v1310 = vpack.c.b16 %v966, %v962
    %v1311 = vpack.c.b16 %v967, %v963
    %v1312 = vpack.c.b16 %v972, %v968
    %v1313 = vpack.c.b16 %v973, %v969
    %v1314 = vpack.c.b16 %v974, %v970
    %v1315 = vpack.c.b16 %v975, %v971
    %v1316 = vpack.c.b16 %v980, %v976
    %v1317 = vpack.c.b16 %v981, %v977
    %v1318 = vpack.c.b16 %v982, %v978
    %v1319 = vpack.c.b16 %v983, %v979
    %v1320 = vpack.c.b16 %v988, %v984
    %v1321 = vpack.c.b16 %v989, %v985
    %v1322 = vpack.c.b16 %v990, %v986
    %v1323 = vpack.c.b16 %v991, %v987
    %v1324 = vpack.c.b16 %v996, %v992
    %v1325 = vpack.c.b16 %v997, %v993
    %v1326 = vpack.c.b16 %v998, %v994
    %v1327 = vpack.c.b16 %v999, %v995
    %v1328 = vpack.c.b16 %v1004, %v1000
    %v1329 = vpack.c.b16 %v1005, %v1001
    %v1330 = vpack.c.b16 %v1006, %v1002
    %v1331 = vpack.c.b16 %v1007, %v1003
    %v1332 = vpack.c.b16 %v1012, %v1008
    %v1333 = vpack.c.b16 %v1013, %v1009
    %v1334 = vpack.c.b16 %v1014, %v1010
    %v1335 = vpack.c.b16 %v1015, %v1011
    %v1336 = vpack.c.b16 %v1020, %v1016
    %v1337 = vpack.c.b16 %v1021, %v1017
    %v1338 = vpack.c.b16 %v1022, %v1018
    %v1339 = vpack.c.b16 %v1023, %v1019
    %v1340 = vpack.c.b16 %v1028, %v1024
    %v1341 = vpack.c.b16 %v1029, %v1025
    %v1342 = vpack.c.b16 %v1030, %v1026
    %v1343 = vpack.c.b16 %v1031, %v1027
    %v1344 = vpack.c.b16 %v1036, %v1032
    %v1345 = vpack.c.b16 %v1037, %v1033
    %v1346 = vpack.c.b16 %v1038, %v1034
    %v1347 = vpack.c.b16 %v1039, %v1035
    %v1348 = vpack.c.b16 %v1044, %v1040
    %v1349 = vpack.c.b16 %v1045, %v1041
    %v1350 = vpack.c.b16 %v1046, %v1042
    %v1351 = vpack.c.b16 %v1047, %v1043
    %v1352 = vpack.c.b16 %v1052, %v1048
    %v1353 = vpack.c.b16 %v1053, %v1049
    %v1354 = vpack.c.b16 %v1054, %v1050
    %v1355 = vpack.c.b16 %v1055, %v1051
    %v1356 = vpack.c.b16 %v1060, %v1056
    %v1357 = vpack.c.b16 %v1061, %v1057
    %v1358 = vpack.c.b16 %v1062, %v1058
    %v1359 = vpack.c.b16 %v1063, %v1059
    %v1360 = vpack.c.b16 %v1068, %v1064
    %v1361 = vpack.c.b16 %v1069, %v1065
    %v1362 = vpack.c.b16 %v1070, %v1066
    %v1363 = vpack.c.b16 %v1071, %v1067
    %v1364 = vpack.c.b16 %v1076, %v1072
    %v1365 = vpack.c.b16 %v1077, %v1073
    %v1366 = vpack.c.b16 %v1078, %v1074
    %v1367 = vpack.c.b16 %v1079, %v1075
    %v1368 = vpack.c.b16 %v1084, %v1080
    %v1369 = vpack.c.b16 %v1085, %v1081
    %v1370 = vpack.c.b16 %v1086, %v1082
    %v1371 = vpack.c.b16 %v1087, %v1083
    %v1372 = vpack.c.b16 %v1092, %v1088
    %v1373 = vpack.c.b16 %v1093, %v1089
    %v1374 = vpack.c.b16 %v1094, %v1090
    %v1375 = vpack.c.b16 %v1095, %v1091
    %v1376 = vpack.c.b16 %v1100, %v1096
    %v1377 = vpack.c.b16 %v1101, %v1097
    %v1378 = vpack.c.b16 %v1102, %v1098
    %v1379 = vpack.c.b16 %v1103, %v1099
    %v1380 = vpack.c.b16 %v1108, %v1104
    %v1381 = vpack.c.b16 %v1109, %v1105
    %v1382 = vpack.c.b16 %v1110, %v1106
    %v1383 = vpack.c.b16 %v1111, %v1107
    %v1384 = vpack.c.b16 %v1116, %v1112
    %v1385 = vpack.c.b16 %v1117, %v1113
    %v1386 = vpack.c.b16 %v1118, %v1114
    %v1387 = vpack.c.b16 %v1119, %v1115
    %v1388 = vpack.c.b16 %v1124, %v1120
    %v1389 = vpack.c.b16 %v1125, %v1121
    %v1390 = vpack.c.b16 %v1126, %v1122
    %v1391 = vpack.c.b16 %v1127, %v1123
    %v1392 = vpack.c.b16 %v1132, %v1128
    %v1393 = vpack.c.b16 %v1133, %v1129
    %v1394 = vpack.c.b16 %v1134, %v1130
    %v1395 = vpack.c.b16 %v1135, %v1131
    %v1396 = vpack.c.b16 %v1140, %v1136
    %v1397 = vpack.c.b16 %v1141, %v1137
    %v1398 = vpack.c.b16 %v1142, %v1138
    %v1399 = vpack.c.b16 %v1143, %v1139
    %1656 = vmatprep.subr.bf16.mxu0 %v1173
    %1657 = vmatpush1.bf16.msra.mxu0 %v1172
    %1658 = vmatprep.subr.bf16.mxu0 %v1169
    %1659 = vmatpush1.bf16.msra.mxu0 %v1168
    %1660 = vmatprep.subr.bf16.mxu0 %v1165
    %1661 = vmatpush1.bf16.msra.mxu0 %v1164
    %1662 = vmatprep.subr.bf16.mxu0 %v1161
    %1663 = vmatpush1.bf16.msra.mxu0 %v1160
    %1664 = vmatprep.subr.bf16.mxu0 %v1157
    %1665 = vmatpush1.bf16.msra.mxu0 %v1156
    %1666 = vmatprep.subr.bf16.mxu0 %v1153
    %1667 = vmatpush1.bf16.msra.mxu0 %v1152
    %1668 = vmatprep.subr.bf16.mxu0 %v1149
    %1669 = vmatpush1.bf16.msra.mxu0 %v1148
    %1670 = vmatprep.subr.bf16.mxu0 %v1145
    %1671 = vmatpush1.bf16.msra.mxu0 %v1144
    %1672 = vmatprep.subr.bf16.mxu0 %v1205
    %1673 = vmatpush2.bf16.msra.mxu0 %v1204
    %1674 = vmatprep.subr.bf16.mxu0 %v1201
    %1675 = vmatpush2.bf16.msra.mxu0 %v1200
    %1676 = vmatprep.subr.bf16.mxu0 %v1197
    %1677 = vmatpush2.bf16.msra.mxu0 %v1196
    %1678 = vmatprep.subr.bf16.mxu0 %v1193
    %1679 = vmatpush2.bf16.msra.mxu0 %v1192
    %1680 = vmatprep.subr.bf16.mxu0 %v1189
    %1681 = vmatpush2.bf16.msra.mxu0 %v1188
    %1682 = vmatprep.subr.bf16.mxu0 %v1185
    %1683 = vmatpush2.bf16.msra.mxu0 %v1184
    %1684 = vmatprep.subr.bf16.mxu0 %v1181
    %1685 = vmatpush2.bf16.msra.mxu0 %v1180
    %1686 = vmatprep.subr.bf16.mxu0 %v1177
    %1687 = vmatpush2.bf16.msra.mxu0 %v1176
    %1688 = vmatprep.mubr.bf16.mxu0 %v361
    %1689 = vmatmul.mubr.bf16.gmra.mxu0 %v360
    %v1690 = vpop.f32.mrf.mxu0
    %v1691 = vadd.f32 %v323, %v1690
    %v1692 = vpop.f32.mrf.mxu0
    %v1693 = vadd.f32 %v327, %v1692
    %v1694 = vpop.f32.mrf.mxu0
    %v1695 = vadd.f32 %v323, %v1694
    %v1696 = vpop.f32.mrf.mxu0
    %v1697 = vadd.f32 %v327, %v1696
    %1698 = vdwg.mxu0
    %1699 = vmatprep.subr.bf16.mxu0 %v1237
    %1700 = vmatpush1.bf16.msra.mxu0 %v1236
    %1701 = vmatprep.subr.bf16.mxu0 %v1233
    %1702 = vmatpush1.bf16.msra.mxu0 %v1232
    %1703 = vmatprep.subr.bf16.mxu0 %v1229
    %1704 = vmatpush1.bf16.msra.mxu0 %v1228
    %1705 = vmatprep.subr.bf16.mxu0 %v1225
    %1706 = vmatpush1.bf16.msra.mxu0 %v1224
    %1707 = vmatprep.subr.bf16.mxu0 %v1221
    %1708 = vmatpush1.bf16.msra.mxu0 %v1220
    %1709 = vmatprep.subr.bf16.mxu0 %v1217
    %1710 = vmatpush1.bf16.msra.mxu0 %v1216
    %1711 = vmatprep.subr.bf16.mxu0 %v1213
    %1712 = vmatpush1.bf16.msra.mxu0 %v1212
    %1713 = vmatprep.subr.bf16.mxu0 %v1209
    %1714 = vmatpush1.bf16.msra.mxu0 %v1208
    %1715 = vmatprep.subr.bf16.mxu0 %v1269
    %1716 = vmatpush2.bf16.msra.mxu0 %v1268
    %1717 = vmatprep.subr.bf16.mxu0 %v1265
    %1718 = vmatpush2.bf16.msra.mxu0 %v1264
    %1719 = vmatprep.subr.bf16.mxu0 %v1261
    %1720 = vmatpush2.bf16.msra.mxu0 %v1260
    %1721 = vmatprep.subr.bf16.mxu0 %v1257
    %1722 = vmatpush2.bf16.msra.mxu0 %v1256
    %1723 = vmatprep.subr.bf16.mxu0 %v1253
    %1724 = vmatpush2.bf16.msra.mxu0 %v1252
    %1725 = vmatprep.subr.bf16.mxu0 %v1249
    %1726 = vmatpush2.bf16.msra.mxu0 %v1248
    %1727 = vmatprep.subr.bf16.mxu0 %v1245
    %1728 = vmatpush2.bf16.msra.mxu0 %v1244
    %1729 = vmatprep.subr.bf16.mxu0 %v1241
    %1730 = vmatpush2.bf16.msra.mxu0 %v1240
    %1731 = vmatprep.mubr.bf16.mxu0 %v363
    %1732 = vmatmul.mubr.bf16.gmra.mxu0 %v362
    %v1733 = vpop.f32.mrf.mxu0
    %v1734 = vadd.f32 %v1691, %v1733
    %v1735 = vpop.f32.mrf.mxu0
    %v1736 = vadd.f32 %v1693, %v1735
    %v1737 = vpop.f32.mrf.mxu0
    %v1738 = vadd.f32 %v1695, %v1737
    %v1739 = vpop.f32.mrf.mxu0
    %v1740 = vadd.f32 %v1697, %v1739
    %1741 = vdwg.mxu0
    %1742 = vmatprep.subr.bf16.mxu0 %v1301
    %1743 = vmatpush1.bf16.msra.mxu0 %v1300
    %1744 = vmatprep.subr.bf16.mxu0 %v1297
    %1745 = vmatpush1.bf16.msra.mxu0 %v1296
    %1746 = vmatprep.subr.bf16.mxu0 %v1293
    %1747 = vmatpush1.bf16.msra.mxu0 %v1292
    %1748 = vmatprep.subr.bf16.mxu0 %v1289
    %1749 = vmatpush1.bf16.msra.mxu0 %v1288
    %1750 = vmatprep.subr.bf16.mxu0 %v1285
    %1751 = vmatpush1.bf16.msra.mxu0 %v1284
    %1752 = vmatprep.subr.bf16.mxu0 %v1281
    %1753 = vmatpush1.bf16.msra.mxu0 %v1280
    %1754 = vmatprep.subr.bf16.mxu0 %v1277
    %1755 = vmatpush1.bf16.msra.mxu0 %v1276
    %1756 = vmatprep.subr.bf16.mxu0 %v1273
    %1757 = vmatpush1.bf16.msra.mxu0 %v1272
    %1758 = vmatprep.subr.bf16.mxu0 %v1333
    %1759 = vmatpush2.bf16.msra.mxu0 %v1332
    %1760 = vmatprep.subr.bf16.mxu0 %v1329
    %1761 = vmatpush2.bf16.msra.mxu0 %v1328
    %1762 = vmatprep.subr.bf16.mxu0 %v1325
    %1763 = vmatpush2.bf16.msra.mxu0 %v1324
    %1764 = vmatprep.subr.bf16.mxu0 %v1321
    %1765 = vmatpush2.bf16.msra.mxu0 %v1320
    %1766 = vmatprep.subr.bf16.mxu0 %v1317
    %1767 = vmatpush2.bf16.msra.mxu0 %v1316
    %1768 = vmatprep.subr.bf16.mxu0 %v1313
    %1769 = vmatpush2.bf16.msra.mxu0 %v1312
    %1770 = vmatprep.subr.bf16.mxu0 %v1309
    %1771 = vmatpush2.bf16.msra.mxu0 %v1308
    %1772 = vmatprep.subr.bf16.mxu0 %v1305
    %1773 = vmatpush2.bf16.msra.mxu0 %v1304
    %1774 = vmatprep.mubr.bf16.mxu0 %v365
    %1775 = vmatmul.mubr.bf16.gmra.mxu0 %v364
    %v1776 = vpop.f32.mrf.mxu0
    %v1777 = vadd.f32 %v1734, %v1776
    %v1778 = vpop.f32.mrf.mxu0
    %v1779 = vadd.f32 %v1736, %v1778
    %v1780 = vpop.f32.mrf.mxu0
    %v1781 = vadd.f32 %v1738, %v1780
    %v1782 = vpop.f32.mrf.mxu0
    %v1783 = vadd.f32 %v1740, %v1782
    %1784 = vdwg.mxu0
    %1785 = vmatprep.subr.bf16.mxu0 %v1365
    %1786 = vmatpush1.bf16.msra.mxu0 %v1364
    %1787 = vmatprep.subr.bf16.mxu0 %v1361
    %1788 = vmatpush1.bf16.msra.mxu0 %v1360
    %1789 = vmatprep.subr.bf16.mxu0 %v1357
    %1790 = vmatpush1.bf16.msra.mxu0 %v1356
    %1791 = vmatprep.subr.bf16.mxu0 %v1353
    %1792 = vmatpush1.bf16.msra.mxu0 %v1352
    %1793 = vmatprep.subr.bf16.mxu0 %v1349
    %1794 = vmatpush1.bf16.msra.mxu0 %v1348
    %1795 = vmatprep.subr.bf16.mxu0 %v1345
    %1796 = vmatpush1.bf16.msra.mxu0 %v1344
    %1797 = vmatprep.subr.bf16.mxu0 %v1341
    %1798 = vmatpush1.bf16.msra.mxu0 %v1340
    %1799 = vmatprep.subr.bf16.mxu0 %v1337
    %1800 = vmatpush1.bf16.msra.mxu0 %v1336
    %1801 = vmatprep.subr.bf16.mxu0 %v1397
    %1802 = vmatpush2.bf16.msra.mxu0 %v1396
    %1803 = vmatprep.subr.bf16.mxu0 %v1393
    %1804 = vmatpush2.bf16.msra.mxu0 %v1392
    %1805 = vmatprep.subr.bf16.mxu0 %v1389
    %1806 = vmatpush2.bf16.msra.mxu0 %v1388
    %1807 = vmatprep.subr.bf16.mxu0 %v1385
    %1808 = vmatpush2.bf16.msra.mxu0 %v1384
    %1809 = vmatprep.subr.bf16.mxu0 %v1381
    %1810 = vmatpush2.bf16.msra.mxu0 %v1380
    %1811 = vmatprep.subr.bf16.mxu0 %v1377
    %1812 = vmatpush2.bf16.msra.mxu0 %v1376
    %1813 = vmatprep.subr.bf16.mxu0 %v1373
    %1814 = vmatpush2.bf16.msra.mxu0 %v1372
    %1815 = vmatprep.subr.bf16.mxu0 %v1369
    %1816 = vmatpush2.bf16.msra.mxu0 %v1368
    %1817 = vmatprep.mubr.bf16.mxu0 %v367
    %1818 = vmatmul.mubr.bf16.gmra.mxu0 %v366
    %v1819 = vpop.f32.mrf.mxu0
    %v1820 = vadd.f32 %v1777, %v1819
    %v1821 = vpop.f32.mrf.mxu0
    %v1822 = vadd.f32 %v1779, %v1821
    %v1823 = vpop.f32.mrf.mxu0
    %v1824 = vadd.f32 %v1781, %v1823
    %v1825 = vpop.f32.mrf.mxu0
    %v1826 = vadd.f32 %v1783, %v1825
    %1827 = vdwg.mxu0
    %1828 = vmatprep.subr.bf16.mxu0 %v1175
    %1829 = vmatpush1.bf16.msra.mxu0 %v1174
    %1830 = vmatprep.subr.bf16.mxu0 %v1171
    %1831 = vmatpush1.bf16.msra.mxu0 %v1170
    %1832 = vmatprep.subr.bf16.mxu0 %v1167
    %1833 = vmatpush1.bf16.msra.mxu0 %v1166
    %1834 = vmatprep.subr.bf16.mxu0 %v1163
    %1835 = vmatpush1.bf16.msra.mxu0 %v1162
    %1836 = vmatprep.subr.bf16.mxu0 %v1159
    %1837 = vmatpush1.bf16.msra.mxu0 %v1158
    %1838 = vmatprep.subr.bf16.mxu0 %v1155
    %1839 = vmatpush1.bf16.msra.mxu0 %v1154
    %1840 = vmatprep.subr.bf16.mxu0 %v1151
    %1841 = vmatpush1.bf16.msra.mxu0 %v1150
    %1842 = vmatprep.subr.bf16.mxu0 %v1147
    %1843 = vmatpush1.bf16.msra.mxu0 %v1146
    %1844 = vmatprep.subr.bf16.mxu0 %v1207
    %1845 = vmatpush2.bf16.msra.mxu0 %v1206
    %1846 = vmatprep.subr.bf16.mxu0 %v1203
    %1847 = vmatpush2.bf16.msra.mxu0 %v1202
    %1848 = vmatprep.subr.bf16.mxu0 %v1199
    %1849 = vmatpush2.bf16.msra.mxu0 %v1198
    %1850 = vmatprep.subr.bf16.mxu0 %v1195
    %1851 = vmatpush2.bf16.msra.mxu0 %v1194
    %1852 = vmatprep.subr.bf16.mxu0 %v1191
    %1853 = vmatpush2.bf16.msra.mxu0 %v1190
    %1854 = vmatprep.subr.bf16.mxu0 %v1187
    %1855 = vmatpush2.bf16.msra.mxu0 %v1186
    %1856 = vmatprep.subr.bf16.mxu0 %v1183
    %1857 = vmatpush2.bf16.msra.mxu0 %v1182
    %1858 = vmatprep.subr.bf16.mxu0 %v1179
    %1859 = vmatpush2.bf16.msra.mxu0 %v1178
    %1860 = vmatprep.mubr.bf16.mxu0 %v361
    %1861 = vmatmul.mubr.bf16.gmra.mxu0 %v360
    %v1862 = vpop.f32.mrf.mxu0
    %v1863 = vadd.f32 %v331, %v1862
    %v1864 = vpop.f32.mrf.mxu0
    %v1865 = vadd.f32 %v335, %v1864
    %v1866 = vpop.f32.mrf.mxu0
    %v1867 = vadd.f32 %v331, %v1866
    %v1868 = vpop.f32.mrf.mxu0
    %v1869 = vadd.f32 %v335, %v1868
    %1870 = vdwg.mxu0
    %1871 = vmatprep.subr.bf16.mxu0 %v1239
    %1872 = vmatpush1.bf16.msra.mxu0 %v1238
    %1873 = vmatprep.subr.bf16.mxu0 %v1235
    %1874 = vmatpush1.bf16.msra.mxu0 %v1234
    %1875 = vmatprep.subr.bf16.mxu0 %v1231
    %1876 = vmatpush1.bf16.msra.mxu0 %v1230
    %1877 = vmatprep.subr.bf16.mxu0 %v1227
    %1878 = vmatpush1.bf16.msra.mxu0 %v1226
    %1879 = vmatprep.subr.bf16.mxu0 %v1223
    %1880 = vmatpush1.bf16.msra.mxu0 %v1222
    %1881 = vmatprep.subr.bf16.mxu0 %v1219
    %1882 = vmatpush1.bf16.msra.mxu0 %v1218
    %1883 = vmatprep.subr.bf16.mxu0 %v1215
    %1884 = vmatpush1.bf16.msra.mxu0 %v1214
    %1885 = vmatprep.subr.bf16.mxu0 %v1211
    %1886 = vmatpush1.bf16.msra.mxu0 %v1210
    %1887 = vmatprep.subr.bf16.mxu0 %v1271
    %1888 = vmatpush2.bf16.msra.mxu0 %v1270
    %1889 = vmatprep.subr.bf16.mxu0 %v1267
    %1890 = vmatpush2.bf16.msra.mxu0 %v1266
    %1891 = vmatprep.subr.bf16.mxu0 %v1263
    %1892 = vmatpush2.bf16.msra.mxu0 %v1262
    %1893 = vmatprep.subr.bf16.mxu0 %v1259
    %1894 = vmatpush2.bf16.msra.mxu0 %v1258
    %1895 = vmatprep.subr.bf16.mxu0 %v1255
    %1896 = vmatpush2.bf16.msra.mxu0 %v1254
    %1897 = vmatprep.subr.bf16.mxu0 %v1251
    %1898 = vmatpush2.bf16.msra.mxu0 %v1250
    %1899 = vmatprep.subr.bf16.mxu0 %v1247
    %1900 = vmatpush2.bf16.msra.mxu0 %v1246
    %1901 = vmatprep.subr.bf16.mxu0 %v1243
    %1902 = vmatpush2.bf16.msra.mxu0 %v1242
    %1903 = vmatprep.mubr.bf16.mxu0 %v363
    %1904 = vmatmul.mubr.bf16.gmra.mxu0 %v362
    %v1905 = vpop.f32.mrf.mxu0
    %v1906 = vadd.f32 %v1863, %v1905
    %v1907 = vpop.f32.mrf.mxu0
    %v1908 = vadd.f32 %v1865, %v1907
    %v1909 = vpop.f32.mrf.mxu0
    %v1910 = vadd.f32 %v1867, %v1909
    %v1911 = vpop.f32.mrf.mxu0
    %v1912 = vadd.f32 %v1869, %v1911
    %1913 = vdwg.mxu0
    %1914 = vmatprep.subr.bf16.mxu0 %v1303
    %1915 = vmatpush1.bf16.msra.mxu0 %v1302
    %1916 = vmatprep.subr.bf16.mxu0 %v1299
    %1917 = vmatpush1.bf16.msra.mxu0 %v1298
    %1918 = vmatprep.subr.bf16.mxu0 %v1295
    %1919 = vmatpush1.bf16.msra.mxu0 %v1294
    %1920 = vmatprep.subr.bf16.mxu0 %v1291
    %1921 = vmatpush1.bf16.msra.mxu0 %v1290
    %1922 = vmatprep.subr.bf16.mxu0 %v1287
    %1923 = vmatpush1.bf16.msra.mxu0 %v1286
    %1924 = vmatprep.subr.bf16.mxu0 %v1283
    %1925 = vmatpush1.bf16.msra.mxu0 %v1282
    %1926 = vmatprep.subr.bf16.mxu0 %v1279
    %1927 = vmatpush1.bf16.msra.mxu0 %v1278
    %1928 = vmatprep.subr.bf16.mxu0 %v1275
    %1929 = vmatpush1.bf16.msra.mxu0 %v1274
    %1930 = vmatprep.subr.bf16.mxu0 %v1335
    %1931 = vmatpush2.bf16.msra.mxu0 %v1334
    %1932 = vmatprep.subr.bf16.mxu0 %v1331
    %1933 = vmatpush2.bf16.msra.mxu0 %v1330
    %1934 = vmatprep.subr.bf16.mxu0 %v1327
    %1935 = vmatpush2.bf16.msra.mxu0 %v1326
    %1936 = vmatprep.subr.bf16.mxu0 %v1323
    %1937 = vmatpush2.bf16.msra.mxu0 %v1322
    %1938 = vmatprep.subr.bf16.mxu0 %v1319
    %1939 = vmatpush2.bf16.msra.mxu0 %v1318
    %1940 = vmatprep.subr.bf16.mxu0 %v1315
    %1941 = vmatpush2.bf16.msra.mxu0 %v1314
    %1942 = vmatprep.subr.bf16.mxu0 %v1311
    %1943 = vmatpush2.bf16.msra.mxu0 %v1310
    %1944 = vmatprep.subr.bf16.mxu0 %v1307
    %1945 = vmatpush2.bf16.msra.mxu0 %v1306
    %1946 = vmatprep.mubr.bf16.mxu0 %v365
    %1947 = vmatmul.mubr.bf16.gmra.mxu0 %v364
    %v1948 = vpop.f32.mrf.mxu0
    %v1949 = vadd.f32 %v1906, %v1948
    %v1950 = vpop.f32.mrf.mxu0
    %v1951 = vadd.f32 %v1908, %v1950
    %v1952 = vpop.f32.mrf.mxu0
    %v1953 = vadd.f32 %v1910, %v1952
    %v1954 = vpop.f32.mrf.mxu0
    %v1955 = vadd.f32 %v1912, %v1954
    %1956 = vdwg.mxu0
    %1957 = vmatprep.subr.bf16.mxu0 %v1367
    %1958 = vmatpush1.bf16.msra.mxu0 %v1366
    %1959 = vmatprep.subr.bf16.mxu0 %v1363
    %1960 = vmatpush1.bf16.msra.mxu0 %v1362
    %1961 = vmatprep.subr.bf16.mxu0 %v1359
    %1962 = vmatpush1.bf16.msra.mxu0 %v1358
    %1963 = vmatprep.subr.bf16.mxu0 %v1355
    %1964 = vmatpush1.bf16.msra.mxu0 %v1354
    %1965 = vmatprep.subr.bf16.mxu0 %v1351
    %1966 = vmatpush1.bf16.msra.mxu0 %v1350
    %1967 = vmatprep.subr.bf16.mxu0 %v1347
    %1968 = vmatpush1.bf16.msra.mxu0 %v1346
    %1969 = vmatprep.subr.bf16.mxu0 %v1343
    %1970 = vmatpush1.bf16.msra.mxu0 %v1342
    %1971 = vmatprep.subr.bf16.mxu0 %v1339
    %1972 = vmatpush1.bf16.msra.mxu0 %v1338
    %1973 = vmatprep.subr.bf16.mxu0 %v1399
    %1974 = vmatpush2.bf16.msra.mxu0 %v1398
    %1975 = vmatprep.subr.bf16.mxu0 %v1395
    %1976 = vmatpush2.bf16.msra.mxu0 %v1394
    %1977 = vmatprep.subr.bf16.mxu0 %v1391
    %1978 = vmatpush2.bf16.msra.mxu0 %v1390
    %1979 = vmatprep.subr.bf16.mxu0 %v1387
    %1980 = vmatpush2.bf16.msra.mxu0 %v1386
    %1981 = vmatprep.subr.bf16.mxu0 %v1383
    %1982 = vmatpush2.bf16.msra.mxu0 %v1382
    %1983 = vmatprep.subr.bf16.mxu0 %v1379
    %1984 = vmatpush2.bf16.msra.mxu0 %v1378
    %1985 = vmatprep.subr.bf16.mxu0 %v1375
    %1986 = vmatpush2.bf16.msra.mxu0 %v1374
    %1987 = vmatprep.subr.bf16.mxu0 %v1371
    %1988 = vmatpush2.bf16.msra.mxu0 %v1370
    %1989 = vmatprep.mubr.bf16.mxu0 %v367
    %1990 = vmatmul.mubr.bf16.gmra.mxu0 %v366
    %v1991 = vpop.f32.mrf.mxu0
    %v1992 = vadd.f32 %v1949, %v1991
    %v1993 = vpop.f32.mrf.mxu0
    %v1994 = vadd.f32 %v1951, %v1993
    %v1995 = vpop.f32.mrf.mxu0
    %v1996 = vadd.f32 %v1953, %v1995
    %v1997 = vpop.f32.mrf.mxu0
    %v1998 = vadd.f32 %v1955, %v1997
    %1999 = vdwg.mxu0
    %v2000 = vmax.f32 %v1820, 0.0
    %v2001 = vmax.f32 %v1822, 0.0
    %v2002 = vmax.f32 %v1992, 0.0
    %v2003 = vmax.f32 %v1994, 0.0
    %v2004 = vmax.f32 %v1824, 0.0
    %v2005 = vmax.f32 %v1826, 0.0
    %v2006 = vmax.f32 %v1996, 0.0
    %v2007 = vmax.f32 %v1998, 0.0
    %v2008 = vld [vmem:[#allocation5] sm:$0xff]
    %v2009 = vld [vmem:[#allocation5 + $0x8] sm:$0xf]
    %v2010 = vld [vmem:[#allocation5 + $0xc] sm:$0xff]
    %v2011 = vld [vmem:[#allocation5 + $0x14] sm:$0xf]
    %v2012 = vld [vmem:[#allocation5 + $0x18] sm:$0xff]
    %v2013 = vld [vmem:[#allocation5 + $0x20] sm:$0xf]
    %v2014 = vld [vmem:[#allocation5 + $0x24] sm:$0xff]
    %v2015 = vld [vmem:[#allocation5 + $0x2c] sm:$0xf]
    %v2016 = vld [vmem:[#allocation5 + $0x30] sm:$0xff]
    %v2017 = vld [vmem:[#allocation5 + $0x38] sm:$0xf]
    %v2018 = vld [vmem:[#allocation5 + $0x3c] sm:$0xff]
    %v2019 = vld [vmem:[#allocation5 + $0x44] sm:$0xf]
    %v2020 = vld [vmem:[#allocation5 + $0x48] sm:$0xff]
    %v2021 = vld [vmem:[#allocation5 + $0x50] sm:$0xf]
    %v2022 = vld [vmem:[#allocation5 + $0x54] sm:$0xff]
    %v2023 = vld [vmem:[#allocation5 + $0x5c] sm:$0xf]
    %v2024 = vld [vmem:[#allocation5 + $0x60] sm:$0xff]
    %v2025 = vld [vmem:[#allocation5 + $0x68] sm:$0xf]
    %v2026 = vld [vmem:[#allocation5 + $0x6c] sm:$0xff]
    %v2027 = vld [vmem:[#allocation5 + $0x74] sm:$0xf]
    %v2028 = vld [vmem:[#allocation5 + $0x78] sm:$0xff]
    %v2029 = vld [vmem:[#allocation5 + $0x80] sm:$0xf]
    %v2030 = vld [vmem:[#allocation5 + $0x84] sm:$0xff]
    %v2031 = vld [vmem:[#allocation5 + $0x8c] sm:$0xf]
    %v2032 = vld [vmem:[#allocation5 + $0x90] sm:$0xff]
    %v2033 = vld [vmem:[#allocation5 + $0x98] sm:$0xf]
    %v2034 = vld [vmem:[#allocation5 + $0x9c] sm:$0xff]
    %v2035 = vld [vmem:[#allocation5 + $0xa4] sm:$0xf]
    %v2036 = vld [vmem:[#allocation5 + $0xa8] sm:$0xff]
    %v2037 = vld [vmem:[#allocation5 + $0xb0] sm:$0xf]
    %v2038 = vld [vmem:[#allocation5 + $0xb4] sm:$0xff]
    %v2039 = vld [vmem:[#allocation5 + $0xbc] sm:$0xf]
    %v2040 = vld [vmem:[#allocation5 + $0xc0] sm:$0xff]
    %v2041 = vld [vmem:[#allocation5 + $0xc8] sm:$0xf]
    %v2042 = vld [vmem:[#allocation5 + $0xcc] sm:$0xff]
    %v2043 = vld [vmem:[#allocation5 + $0xd4] sm:$0xf]
    %v2044 = vld [vmem:[#allocation5 + $0xd8] sm:$0xff]
    %v2045 = vld [vmem:[#allocation5 + $0xe0] sm:$0xf]
    %v2046 = vld [vmem:[#allocation5 + $0xe4] sm:$0xff]
    %v2047 = vld [vmem:[#allocation5 + $0xec] sm:$0xf]
    %v2048 = vld [vmem:[#allocation5 + $0xf0] sm:$0xff]
    %v2049 = vld [vmem:[#allocation5 + $0xf8] sm:$0xf]
    %v2050 = vld [vmem:[#allocation5 + $0xfc] sm:$0xff]
    %v2051 = vld [vmem:[#allocation5 + $0x104] sm:$0xf]
    %v2052 = vld [vmem:[#allocation5 + $0x108] sm:$0xff]
    %v2053 = vld [vmem:[#allocation5 + $0x110] sm:$0xf]
    %v2054 = vld [vmem:[#allocation5 + $0x114] sm:$0xff]
    %v2055 = vld [vmem:[#allocation5 + $0x11c] sm:$0xf]
    %v2056 = vld [vmem:[#allocation5 + $0x120] sm:$0xff]
    %v2057 = vld [vmem:[#allocation5 + $0x128] sm:$0xf]
    %v2058 = vld [vmem:[#allocation5 + $0x12c] sm:$0xff]
    %v2059 = vld [vmem:[#allocation5 + $0x134] sm:$0xf]
    %v2060 = vld [vmem:[#allocation5 + $0x138] sm:$0xff]
    %v2061 = vld [vmem:[#allocation5 + $0x140] sm:$0xf]
    %v2062 = vld [vmem:[#allocation5 + $0x144] sm:$0xff]
    %v2063 = vld [vmem:[#allocation5 + $0x14c] sm:$0xf]
    %v2064 = vld [vmem:[#allocation5 + $0x150] sm:$0xff]
    %v2065 = vld [vmem:[#allocation5 + $0x158] sm:$0xf]
    %v2066 = vld [vmem:[#allocation5 + $0x15c] sm:$0xff]
    %v2067 = vld [vmem:[#allocation5 + $0x164] sm:$0xf]
    %v2068 = vld [vmem:[#allocation5 + $0x168] sm:$0xff]
    %v2069 = vld [vmem:[#allocation5 + $0x170] sm:$0xf]
    %v2070 = vld [vmem:[#allocation5 + $0x174] sm:$0xff]
    %v2071 = vld [vmem:[#allocation5 + $0x17c] sm:$0xf]
    %v2072 = vld [vmem:[#allocation5 + $0x180] sm:$0xff]
    %v2073 = vld [vmem:[#allocation5 + $0x188] sm:$0xf]
    %v2074 = vld [vmem:[#allocation5 + $0x18c] sm:$0xff]
    %v2075 = vld [vmem:[#allocation5 + $0x194] sm:$0xf]
    %v2076 = vld [vmem:[#allocation5 + $0x198] sm:$0xff]
    %v2077 = vld [vmem:[#allocation5 + $0x1a0] sm:$0xf]
    %v2078 = vld [vmem:[#allocation5 + $0x1a4] sm:$0xff]
    %v2079 = vld [vmem:[#allocation5 + $0x1ac] sm:$0xf]
    %v2080 = vld [vmem:[#allocation5 + $0x1b0] sm:$0xff]
    %v2081 = vld [vmem:[#allocation5 + $0x1b8] sm:$0xf]
    %v2082 = vld [vmem:[#allocation5 + $0x1bc] sm:$0xff]
    %v2083 = vld [vmem:[#allocation5 + $0x1c4] sm:$0xf]
    %v2084 = vld [vmem:[#allocation5 + $0x1c8] sm:$0xff]
    %v2085 = vld [vmem:[#allocation5 + $0x1d0] sm:$0xf]
    %v2086 = vld [vmem:[#allocation5 + $0x1d4] sm:$0xff]
    %v2087 = vld [vmem:[#allocation5 + $0x1dc] sm:$0xf]
    %v2088 = vld [vmem:[#allocation5 + $0x1e0] sm:$0xff]
    %v2089 = vld [vmem:[#allocation5 + $0x1e8] sm:$0xf]
    %v2090 = vld [vmem:[#allocation5 + $0x1ec] sm:$0xff]
    %v2091 = vld [vmem:[#allocation5 + $0x1f4] sm:$0xf]
    %v2092 = vld [vmem:[#allocation5 + $0x1f8] sm:$0xff]
    %v2093 = vld [vmem:[#allocation5 + $0x200] sm:$0xf]
    %v2094 = vld [vmem:[#allocation5 + $0x204] sm:$0xff]
    %v2095 = vld [vmem:[#allocation5 + $0x20c] sm:$0xf]
    %v2096 = vld [vmem:[#allocation5 + $0x210] sm:$0xff]
    %v2097 = vld [vmem:[#allocation5 + $0x218] sm:$0xf]
    %v2098 = vld [vmem:[#allocation5 + $0x21c] sm:$0xff]
    %v2099 = vld [vmem:[#allocation5 + $0x224] sm:$0xf]
    %v2100 = vld [vmem:[#allocation5 + $0x228] sm:$0xff]
    %v2101 = vld [vmem:[#allocation5 + $0x230] sm:$0xf]
    %v2102 = vld [vmem:[#allocation5 + $0x234] sm:$0xff]
    %v2103 = vld [vmem:[#allocation5 + $0x23c] sm:$0xf]
    %v2104 = vld [vmem:[#allocation5 + $0x240] sm:$0xff]
    %v2105 = vld [vmem:[#allocation5 + $0x248] sm:$0xf]
    %v2106 = vld [vmem:[#allocation5 + $0x24c] sm:$0xff]
    %v2107 = vld [vmem:[#allocation5 + $0x254] sm:$0xf]
    %v2108 = vld [vmem:[#allocation5 + $0x258] sm:$0xff]
    %v2109 = vld [vmem:[#allocation5 + $0x260] sm:$0xf]
    %v2110 = vld [vmem:[#allocation5 + $0x264] sm:$0xff]
    %v2111 = vld [vmem:[#allocation5 + $0x26c] sm:$0xf]
    %v2112 = vld [vmem:[#allocation5 + $0x270] sm:$0xff]
    %v2113 = vld [vmem:[#allocation5 + $0x278] sm:$0xf]
    %v2114 = vld [vmem:[#allocation5 + $0x27c] sm:$0xff]
    %v2115 = vld [vmem:[#allocation5 + $0x284] sm:$0xf]
    %v2116 = vld [vmem:[#allocation5 + $0x288] sm:$0xff]
    %v2117 = vld [vmem:[#allocation5 + $0x290] sm:$0xf]
    %v2118 = vld [vmem:[#allocation5 + $0x294] sm:$0xff]
    %v2119 = vld [vmem:[#allocation5 + $0x29c] sm:$0xf]
    %v2120 = vld [vmem:[#allocation5 + $0x2a0] sm:$0xff]
    %v2121 = vld [vmem:[#allocation5 + $0x2a8] sm:$0xf]
    %v2122 = vld [vmem:[#allocation5 + $0x2ac] sm:$0xff]
    %v2123 = vld [vmem:[#allocation5 + $0x2b4] sm:$0xf]
    %v2124 = vld [vmem:[#allocation5 + $0x2b8] sm:$0xff]
    %v2125 = vld [vmem:[#allocation5 + $0x2c0] sm:$0xf]
    %v2126 = vld [vmem:[#allocation5 + $0x2c4] sm:$0xff]
    %v2127 = vld [vmem:[#allocation5 + $0x2cc] sm:$0xf]
    %v2128 = vld [vmem:[#allocation5 + $0x2d0] sm:$0xff]
    %v2129 = vld [vmem:[#allocation5 + $0x2d8] sm:$0xf]
    %v2130 = vld [vmem:[#allocation5 + $0x2dc] sm:$0xff]
    %v2131 = vld [vmem:[#allocation5 + $0x2e4] sm:$0xf]
    %v2132 = vld [vmem:[#allocation5 + $0x2e8] sm:$0xff]
    %v2133 = vld [vmem:[#allocation5 + $0x2f0] sm:$0xf]
    %v2134 = vld [vmem:[#allocation5 + $0x2f4] sm:$0xff]
    %v2135 = vld [vmem:[#allocation5 + $0x2fc] sm:$0xf]
    %v2136 = vpack.c.bf16 %v2004, %v2000
    %v2137 = vpack.c.bf16 %v2005, %v2001
    %v2138 = vpack.c.bf16 %v2006, %v2002
    %v2139 = vpack.c.bf16 %v2007, %v2003
    %v2140 = vlaneseq
    %v2141 = vshrl.u32 %v2140, 7
    %v2142 = vsub.s32 1, %v2141
    %v2143 = vrot.slane %v52, %v2142
    %v2144 = vlaneseq
    %v2145 = vshrl.u32 %v2144, 7
    %v2146 = vsub.s32 1, %v2145
    %v2147 = vrot.slane %v53, %v2146
    %v2148 = vlaneseq
    %v2149 = vshrl.u32 %v2148, 7
    %v2150 = vsub.s32 1, %v2149
    %v2151 = vrot.slane %v54, %v2150
    %v2280 = vunpack.c.l.b16 %v2008
    %v2281 = vunpack.c.h.b16 %v2008
    %v2282 = vunpack.c.l.b16 %v2009
    %v2283 = vunpack.c.l.b16 %v2010
    %v2284 = vunpack.c.h.b16 %v2010
    %v2285 = vunpack.c.l.b16 %v2011
    %v2286 = vunpack.c.l.b16 %v2012
    %v2287 = vunpack.c.h.b16 %v2012
    %v2288 = vunpack.c.l.b16 %v2013
    %v2289 = vunpack.c.l.b16 %v2014
    %v2290 = vunpack.c.h.b16 %v2014
    %v2291 = vunpack.c.l.b16 %v2015
    %v2292 = vunpack.c.l.b16 %v2016
    %v2293 = vunpack.c.h.b16 %v2016
    %v2294 = vunpack.c.l.b16 %v2017
    %v2295 = vunpack.c.l.b16 %v2018
    %v2296 = vunpack.c.h.b16 %v2018
    %v2297 = vunpack.c.l.b16 %v2019
    %v2298 = vunpack.c.l.b16 %v2020
    %v2299 = vunpack.c.h.b16 %v2020
    %v2300 = vunpack.c.l.b16 %v2021
    %v2301 = vunpack.c.l.b16 %v2022
    %v2302 = vunpack.c.h.b16 %v2022
    %v2303 = vunpack.c.l.b16 %v2023
    %v2304 = vunpack.c.l.b16 %v2024
    %v2305 = vunpack.c.h.b16 %v2024
    %v2306 = vunpack.c.l.b16 %v2025
    %v2307 = vunpack.c.l.b16 %v2026
    %v2308 = vunpack.c.h.b16 %v2026
    %v2309 = vunpack.c.l.b16 %v2027
    %v2310 = vunpack.c.l.b16 %v2028
    %v2311 = vunpack.c.h.b16 %v2028
    %v2312 = vunpack.c.l.b16 %v2029
    %v2313 = vunpack.c.l.b16 %v2030
    %v2314 = vunpack.c.h.b16 %v2030
    %v2315 = vunpack.c.l.b16 %v2031
    %v2316 = vunpack.c.l.b16 %v2032
    %v2317 = vunpack.c.h.b16 %v2032
    %v2318 = vunpack.c.l.b16 %v2033
    %v2319 = vunpack.c.l.b16 %v2034
    %v2320 = vunpack.c.h.b16 %v2034
    %v2321 = vunpack.c.l.b16 %v2035
    %v2322 = vunpack.c.l.b16 %v2036
    %v2323 = vunpack.c.h.b16 %v2036
    %v2324 = vunpack.c.l.b16 %v2037
    %v2325 = vunpack.c.l.b16 %v2038
    %v2326 = vunpack.c.h.b16 %v2038
    %v2327 = vunpack.c.l.b16 %v2039
    %v2328 = vunpack.c.l.b16 %v2040
    %v2329 = vunpack.c.h.b16 %v2040
    %v2330 = vunpack.c.l.b16 %v2041
    %v2331 = vunpack.c.l.b16 %v2042
    %v2332 = vunpack.c.h.b16 %v2042
    %v2333 = vunpack.c.l.b16 %v2043
    %v2334 = vunpack.c.l.b16 %v2044
    %v2335 = vunpack.c.h.b16 %v2044
    %v2336 = vunpack.c.l.b16 %v2045
    %v2337 = vunpack.c.l.b16 %v2046
    %v2338 = vunpack.c.h.b16 %v2046
    %v2339 = vunpack.c.l.b16 %v2047
    %v2340 = vunpack.c.l.b16 %v2048
    %v2341 = vunpack.c.h.b16 %v2048
    %v2342 = vunpack.c.l.b16 %v2049
    %v2343 = vunpack.c.l.b16 %v2050
    %v2344 = vunpack.c.h.b16 %v2050
    %v2345 = vunpack.c.l.b16 %v2051
    %v2346 = vunpack.c.l.b16 %v2052
    %v2347 = vunpack.c.h.b16 %v2052
    %v2348 = vunpack.c.l.b16 %v2053
    %v2349 = vunpack.c.l.b16 %v2054
    %v2350 = vunpack.c.h.b16 %v2054
    %v2351 = vunpack.c.l.b16 %v2055
    %v2352 = vunpack.c.l.b16 %v2056
    %v2353 = vunpack.c.h.b16 %v2056
    %v2354 = vunpack.c.l.b16 %v2057
    %v2355 = vunpack.c.l.b16 %v2058
    %v2356 = vunpack.c.h.b16 %v2058
    %v2357 = vunpack.c.l.b16 %v2059
    %v2358 = vunpack.c.l.b16 %v2060
    %v2359 = vunpack.c.h.b16 %v2060
    %v2360 = vunpack.c.l.b16 %v2061
    %v2361 = vunpack.c.l.b16 %v2062
    %v2362 = vunpack.c.h.b16 %v2062
    %v2363 = vunpack.c.l.b16 %v2063
    %v2364 = vunpack.c.l.b16 %v2064
    %v2365 = vunpack.c.h.b16 %v2064
    %v2366 = vunpack.c.l.b16 %v2065
    %v2367 = vunpack.c.l.b16 %v2066
    %v2368 = vunpack.c.h.b16 %v2066
    %v2369 = vunpack.c.l.b16 %v2067
    %v2370 = vunpack.c.l.b16 %v2068
    %v2371 = vunpack.c.h.b16 %v2068
    %v2372 = vunpack.c.l.b16 %v2069
    %v2373 = vunpack.c.l.b16 %v2070
    %v2374 = vunpack.c.h.b16 %v2070
    %v2375 = vunpack.c.l.b16 %v2071
    %v2376 = vunpack.c.l.b16 %v2072
    %v2377 = vunpack.c.h.b16 %v2072
    %v2378 = vunpack.c.l.b16 %v2073
    %v2379 = vunpack.c.l.b16 %v2074
    %v2380 = vunpack.c.h.b16 %v2074
    %v2381 = vunpack.c.l.b16 %v2075
    %v2382 = vunpack.c.l.b16 %v2076
    %v2383 = vunpack.c.h.b16 %v2076
    %v2384 = vunpack.c.l.b16 %v2077
    %v2385 = vunpack.c.l.b16 %v2078
    %v2386 = vunpack.c.h.b16 %v2078
    %v2387 = vunpack.c.l.b16 %v2079
    %v2388 = vunpack.c.l.b16 %v2080
    %v2389 = vunpack.c.h.b16 %v2080
    %v2390 = vunpack.c.l.b16 %v2081
    %v2391 = vunpack.c.l.b16 %v2082
    %v2392 = vunpack.c.h.b16 %v2082
    %v2393 = vunpack.c.l.b16 %v2083
    %v2394 = vunpack.c.l.b16 %v2084
    %v2395 = vunpack.c.h.b16 %v2084
    %v2396 = vunpack.c.l.b16 %v2085
    %v2397 = vunpack.c.l.b16 %v2086
    %v2398 = vunpack.c.h.b16 %v2086
    %v2399 = vunpack.c.l.b16 %v2087
    %v2400 = vunpack.c.l.b16 %v2088
    %v2401 = vunpack.c.h.b16 %v2088
    %v2402 = vunpack.c.l.b16 %v2089
    %v2403 = vunpack.c.l.b16 %v2090
    %v2404 = vunpack.c.h.b16 %v2090
    %v2405 = vunpack.c.l.b16 %v2091
    %v2406 = vunpack.c.l.b16 %v2092
    %v2407 = vunpack.c.h.b16 %v2092
    %v2408 = vunpack.c.l.b16 %v2093
    %v2409 = vunpack.c.l.b16 %v2094
    %v2410 = vunpack.c.h.b16 %v2094
    %v2411 = vunpack.c.l.b16 %v2095
    %v2412 = vunpack.c.l.b16 %v2096
    %v2413 = vunpack.c.h.b16 %v2096
    %v2414 = vunpack.c.l.b16 %v2097
    %v2415 = vunpack.c.l.b16 %v2098
    %v2416 = vunpack.c.h.b16 %v2098
    %v2417 = vunpack.c.l.b16 %v2099
    %v2418 = vunpack.c.l.b16 %v2100
    %v2419 = vunpack.c.h.b16 %v2100
    %v2420 = vunpack.c.l.b16 %v2101
    %v2421 = vunpack.c.l.b16 %v2102
    %v2422 = vunpack.c.h.b16 %v2102
    %v2423 = vunpack.c.l.b16 %v2103
    %v2424 = vunpack.c.l.b16 %v2104
    %v2425 = vunpack.c.h.b16 %v2104
    %v2426 = vunpack.c.l.b16 %v2105
    %v2427 = vunpack.c.l.b16 %v2106
    %v2428 = vunpack.c.h.b16 %v2106
    %v2429 = vunpack.c.l.b16 %v2107
    %v2430 = vunpack.c.l.b16 %v2108
    %v2431 = vunpack.c.h.b16 %v2108
    %v2432 = vunpack.c.l.b16 %v2109
    %v2433 = vunpack.c.l.b16 %v2110
    %v2434 = vunpack.c.h.b16 %v2110
    %v2435 = vunpack.c.l.b16 %v2111
    %v2436 = vunpack.c.l.b16 %v2112
    %v2437 = vunpack.c.h.b16 %v2112
    %v2438 = vunpack.c.l.b16 %v2113
    %v2439 = vunpack.c.l.b16 %v2114
    %v2440 = vunpack.c.h.b16 %v2114
    %v2441 = vunpack.c.l.b16 %v2115
    %v2442 = vunpack.c.l.b16 %v2116
    %v2443 = vunpack.c.h.b16 %v2116
    %v2444 = vunpack.c.l.b16 %v2117
    %v2445 = vunpack.c.l.b16 %v2118
    %v2446 = vunpack.c.h.b16 %v2118
    %v2447 = vunpack.c.l.b16 %v2119
    %v2448 = vunpack.c.l.b16 %v2120
    %v2449 = vunpack.c.h.b16 %v2120
    %v2450 = vunpack.c.l.b16 %v2121
    %v2451 = vunpack.c.l.b16 %v2122
    %v2452 = vunpack.c.h.b16 %v2122
    %v2453 = vunpack.c.l.b16 %v2123
    %v2454 = vunpack.c.l.b16 %v2124
    %v2455 = vunpack.c.h.b16 %v2124
    %v2456 = vunpack.c.l.b16 %v2125
    %v2457 = vunpack.c.l.b16 %v2126
    %v2458 = vunpack.c.h.b16 %v2126
    %v2459 = vunpack.c.l.b16 %v2127
    %v2460 = vunpack.c.l.b16 %v2128
    %v2461 = vunpack.c.h.b16 %v2128
    %v2462 = vunpack.c.l.b16 %v2129
    %v2463 = vunpack.c.l.b16 %v2130
    %v2464 = vunpack.c.h.b16 %v2130
    %v2465 = vunpack.c.l.b16 %v2131
    %v2466 = vunpack.c.l.b16 %v2132
    %v2467 = vunpack.c.h.b16 %v2132
    %v2468 = vunpack.c.l.b16 %v2133
    %v2469 = vunpack.c.l.b16 %v2134
    %v2470 = vunpack.c.h.b16 %v2134
    %v2471 = vunpack.c.l.b16 %v2135
    %v2472 = vpack.c.b16 %v2283, %v2280
    %v2473 = vpack.c.b16 %v2284, %v2281
    %v2474 = vpack.c.b16 %v2285, %v2282
    %v2475 = vpack.c.b16 %v2289, %v2286
    %v2476 = vpack.c.b16 %v2290, %v2287
    %v2477 = vpack.c.b16 %v2291, %v2288
    %v2478 = vpack.c.b16 %v2295, %v2292
    %v2479 = vpack.c.b16 %v2296, %v2293
    %v2480 = vpack.c.b16 %v2297, %v2294
    %v2481 = vpack.c.b16 %v2301, %v2298
    %v2482 = vpack.c.b16 %v2302, %v2299
    %v2483 = vpack.c.b16 %v2303, %v2300
    %v2484 = vpack.c.b16 %v2307, %v2304
    %v2485 = vpack.c.b16 %v2308, %v2305
    %v2486 = vpack.c.b16 %v2309, %v2306
    %v2487 = vpack.c.b16 %v2313, %v2310
    %v2488 = vpack.c.b16 %v2314, %v2311
    %v2489 = vpack.c.b16 %v2315, %v2312
    %v2490 = vpack.c.b16 %v2319, %v2316
    %v2491 = vpack.c.b16 %v2320, %v2317
    %v2492 = vpack.c.b16 %v2321, %v2318
    %v2493 = vpack.c.b16 %v2325, %v2322
    %v2494 = vpack.c.b16 %v2326, %v2323
    %v2495 = vpack.c.b16 %v2327, %v2324
    %v2496 = vpack.c.b16 %v2331, %v2328
    %v2497 = vpack.c.b16 %v2332, %v2329
    %v2498 = vpack.c.b16 %v2333, %v2330
    %v2499 = vpack.c.b16 %v2337, %v2334
    %v2500 = vpack.c.b16 %v2338, %v2335
    %v2501 = vpack.c.b16 %v2339, %v2336
    %v2502 = vpack.c.b16 %v2343, %v2340
    %v2503 = vpack.c.b16 %v2344, %v2341
    %v2504 = vpack.c.b16 %v2345, %v2342
    %v2505 = vpack.c.b16 %v2349, %v2346
    %v2506 = vpack.c.b16 %v2350, %v2347
    %v2507 = vpack.c.b16 %v2351, %v2348
    %v2508 = vpack.c.b16 %v2355, %v2352
    %v2509 = vpack.c.b16 %v2356, %v2353
    %v2510 = vpack.c.b16 %v2357, %v2354
    %v2511 = vpack.c.b16 %v2361, %v2358
    %v2512 = vpack.c.b16 %v2362, %v2359
    %v2513 = vpack.c.b16 %v2363, %v2360
    %v2514 = vpack.c.b16 %v2367, %v2364
    %v2515 = vpack.c.b16 %v2368, %v2365
    %v2516 = vpack.c.b16 %v2369, %v2366
    %v2517 = vpack.c.b16 %v2373, %v2370
    %v2518 = vpack.c.b16 %v2374, %v2371
    %v2519 = vpack.c.b16 %v2375, %v2372
    %v2520 = vpack.c.b16 %v2379, %v2376
    %v2521 = vpack.c.b16 %v2380, %v2377
    %v2522 = vpack.c.b16 %v2381, %v2378
    %v2523 = vpack.c.b16 %v2385, %v2382
    %v2524 = vpack.c.b16 %v2386, %v2383
    %v2525 = vpack.c.b16 %v2387, %v2384
    %v2526 = vpack.c.b16 %v2391, %v2388
    %v2527 = vpack.c.b16 %v2392, %v2389
    %v2528 = vpack.c.b16 %v2393, %v2390
    %v2529 = vpack.c.b16 %v2397, %v2394
    %v2530 = vpack.c.b16 %v2398, %v2395
    %v2531 = vpack.c.b16 %v2399, %v2396
    %v2532 = vpack.c.b16 %v2403, %v2400
    %v2533 = vpack.c.b16 %v2404, %v2401
    %v2534 = vpack.c.b16 %v2405, %v2402
    %v2535 = vpack.c.b16 %v2409, %v2406
    %v2536 = vpack.c.b16 %v2410, %v2407
    %v2537 = vpack.c.b16 %v2411, %v2408
    %v2538 = vpack.c.b16 %v2415, %v2412
    %v2539 = vpack.c.b16 %v2416, %v2413
    %v2540 = vpack.c.b16 %v2417, %v2414
    %v2541 = vpack.c.b16 %v2421, %v2418
    %v2542 = vpack.c.b16 %v2422, %v2419
    %v2543 = vpack.c.b16 %v2423, %v2420
    %v2544 = vpack.c.b16 %v2427, %v2424
    %v2545 = vpack.c.b16 %v2428, %v2425
    %v2546 = vpack.c.b16 %v2429, %v2426
    %v2547 = vpack.c.b16 %v2433, %v2430
    %v2548 = vpack.c.b16 %v2434, %v2431
    %v2549 = vpack.c.b16 %v2435, %v2432
    %v2550 = vpack.c.b16 %v2439, %v2436
    %v2551 = vpack.c.b16 %v2440, %v2437
    %v2552 = vpack.c.b16 %v2441, %v2438
    %v2553 = vpack.c.b16 %v2445, %v2442
    %v2554 = vpack.c.b16 %v2446, %v2443
    %v2555 = vpack.c.b16 %v2447, %v2444
    %v2556 = vpack.c.b16 %v2451, %v2448
    %v2557 = vpack.c.b16 %v2452, %v2449
    %v2558 = vpack.c.b16 %v2453, %v2450
    %v2559 = vpack.c.b16 %v2457, %v2454
    %v2560 = vpack.c.b16 %v2458, %v2455
    %v2561 = vpack.c.b16 %v2459, %v2456
    %v2562 = vpack.c.b16 %v2463, %v2460
    %v2563 = vpack.c.b16 %v2464, %v2461
    %v2564 = vpack.c.b16 %v2465, %v2462
    %v2565 = vpack.c.b16 %v2469, %v2466
    %v2566 = vpack.c.b16 %v2470, %v2467
    %v2567 = vpack.c.b16 %v2471, %v2468
    %2664 = vmatprep.subr.bf16.mxu0 %v2494
    %2665 = vmatpush1.bf16.msra.mxu0 %v2493
    %2666 = vmatprep.subr.bf16.mxu0 %v2491
    %2667 = vmatpush1.bf16.msra.mxu0 %v2490
    %2668 = vmatprep.subr.bf16.mxu0 %v2488
    %2669 = vmatpush1.bf16.msra.mxu0 %v2487
    %2670 = vmatprep.subr.bf16.mxu0 %v2485
    %2671 = vmatpush1.bf16.msra.mxu0 %v2484
    %2672 = vmatprep.subr.bf16.mxu0 %v2482
    %2673 = vmatpush1.bf16.msra.mxu0 %v2481
    %2674 = vmatprep.subr.bf16.mxu0 %v2479
    %2675 = vmatpush1.bf16.msra.mxu0 %v2478
    %2676 = vmatprep.subr.bf16.mxu0 %v2476
    %2677 = vmatpush1.bf16.msra.mxu0 %v2475
    %2678 = vmatprep.subr.bf16.mxu0 %v2473
    %2679 = vmatpush1.bf16.msra.mxu0 %v2472
    %2680 = vmatprep.subr.bf16.mxu0 %v2518
    %2681 = vmatpush2.bf16.msra.mxu0 %v2517
    %2682 = vmatprep.subr.bf16.mxu0 %v2515
    %2683 = vmatpush2.bf16.msra.mxu0 %v2514
    %2684 = vmatprep.subr.bf16.mxu0 %v2512
    %2685 = vmatpush2.bf16.msra.mxu0 %v2511
    %2686 = vmatprep.subr.bf16.mxu0 %v2509
    %2687 = vmatpush2.bf16.msra.mxu0 %v2508
    %2688 = vmatprep.subr.bf16.mxu0 %v2506
    %2689 = vmatpush2.bf16.msra.mxu0 %v2505
    %2690 = vmatprep.subr.bf16.mxu0 %v2503
    %2691 = vmatpush2.bf16.msra.mxu0 %v2502
    %2692 = vmatprep.subr.bf16.mxu0 %v2500
    %2693 = vmatpush2.bf16.msra.mxu0 %v2499
    %2694 = vmatprep.subr.bf16.mxu0 %v2497
    %2695 = vmatpush2.bf16.msra.mxu0 %v2496
    %2696 = vmatprep.mubr.bf16.mxu0 %v2137
    %2697 = vmatmul.mubr.bf16.gmra.mxu0 %v2136
    %v2698 = vpop.f32.mrf.mxu0
    %v2699 = vadd.f32 %v2143, %v2698
    %v2700 = vpop.f32.mrf.mxu0
    %v2701 = vadd.f32 %v2147, %v2700
    %v2702 = vpop.f32.mrf.mxu0
    %v2703 = vadd.f32 %v2143, %v2702
    %v2704 = vpop.f32.mrf.mxu0
    %v2705 = vadd.f32 %v2147, %v2704
    %2706 = vdwg.mxu0
    %2707 = vmatprep.subr.bf16.mxu0 %v2542
    %2708 = vmatpush1.bf16.msra.mxu0 %v2541
    %2709 = vmatprep.subr.bf16.mxu0 %v2539
    %2710 = vmatpush1.bf16.msra.mxu0 %v2538
    %2711 = vmatprep.subr.bf16.mxu0 %v2536
    %2712 = vmatpush1.bf16.msra.mxu0 %v2535
    %2713 = vmatprep.subr.bf16.mxu0 %v2533
    %2714 = vmatpush1.bf16.msra.mxu0 %v2532
    %2715 = vmatprep.subr.bf16.mxu0 %v2530
    %2716 = vmatpush1.bf16.msra.mxu0 %v2529
    %2717 = vmatprep.subr.bf16.mxu0 %v2527
    %2718 = vmatpush1.bf16.msra.mxu0 %v2526
    %2719 = vmatprep.subr.bf16.mxu0 %v2524
    %2720 = vmatpush1.bf16.msra.mxu0 %v2523
    %2721 = vmatprep.subr.bf16.mxu0 %v2521
    %2722 = vmatpush1.bf16.msra.mxu0 %v2520
    %2723 = vmatprep.subr.bf16.mxu0 %v2566
    %2724 = vmatpush2.bf16.msra.mxu0 %v2565
    %2725 = vmatprep.subr.bf16.mxu0 %v2563
    %2726 = vmatpush2.bf16.msra.mxu0 %v2562
    %2727 = vmatprep.subr.bf16.mxu0 %v2560
    %2728 = vmatpush2.bf16.msra.mxu0 %v2559
    %2729 = vmatprep.subr.bf16.mxu0 %v2557
    %2730 = vmatpush2.bf16.msra.mxu0 %v2556
    %2731 = vmatprep.subr.bf16.mxu0 %v2554
    %2732 = vmatpush2.bf16.msra.mxu0 %v2553
    %2733 = vmatprep.subr.bf16.mxu0 %v2551
    %2734 = vmatpush2.bf16.msra.mxu0 %v2550
    %2735 = vmatprep.subr.bf16.mxu0 %v2548
    %2736 = vmatpush2.bf16.msra.mxu0 %v2547
    %2737 = vmatprep.subr.bf16.mxu0 %v2545
    %2738 = vmatpush2.bf16.msra.mxu0 %v2544
    %2739 = vmatprep.mubr.bf16.mxu0 %v2139
    %2740 = vmatmul.mubr.bf16.gmra.mxu0 %v2138
    %v2741 = vpop.f32.mrf.mxu0
    %v2742 = vadd.f32 %v2699, %v2741
    %v2743 = vpop.f32.mrf.mxu0
    %v2744 = vadd.f32 %v2701, %v2743
    %v2745 = vpop.f32.mrf.mxu0
    %v2746 = vadd.f32 %v2703, %v2745
    %v2747 = vpop.f32.mrf.mxu0
    %v2748 = vadd.f32 %v2705, %v2747
    %2749 = vdwg.mxu0
    %2750 = vmatprep.subr.bf16.mxu0 0
    %2751 = vmatpush1.bf16.msra.mxu0 %v2495
    %2752 = vmatprep.subr.bf16.mxu0 0
    %2753 = vmatpush1.bf16.msra.mxu0 %v2492
    %2754 = vmatprep.subr.bf16.mxu0 0
    %2755 = vmatpush1.bf16.msra.mxu0 %v2489
    %2756 = vmatprep.subr.bf16.mxu0 0
    %2757 = vmatpush1.bf16.msra.mxu0 %v2486
    %2758 = vmatprep.subr.bf16.mxu0 0
    %2759 = vmatpush1.bf16.msra.mxu0 %v2483
    %2760 = vmatprep.subr.bf16.mxu0 0
    %2761 = vmatpush1.bf16.msra.mxu0 %v2480
    %2762 = vmatprep.subr.bf16.mxu0 0
    %2763 = vmatpush1.bf16.msra.mxu0 %v2477
    %2764 = vmatprep.subr.bf16.mxu0 0
    %2765 = vmatpush1.bf16.msra.mxu0 %v2474
    %2766 = vmatprep.subr.bf16.mxu0 0
    %2767 = vmatpush2.bf16.msra.mxu0 %v2519
    %2768 = vmatprep.subr.bf16.mxu0 0
    %2769 = vmatpush2.bf16.msra.mxu0 %v2516
    %2770 = vmatprep.subr.bf16.mxu0 0
    %2771 = vmatpush2.bf16.msra.mxu0 %v2513
    %2772 = vmatprep.subr.bf16.mxu0 0
    %2773 = vmatpush2.bf16.msra.mxu0 %v2510
    %2774 = vmatprep.subr.bf16.mxu0 0
    %2775 = vmatpush2.bf16.msra.mxu0 %v2507
    %2776 = vmatprep.subr.bf16.mxu0 0
    %2777 = vmatpush2.bf16.msra.mxu0 %v2504
    %2778 = vmatprep.subr.bf16.mxu0 0
    %2779 = vmatpush2.bf16.msra.mxu0 %v2501
    %2780 = vmatprep.subr.bf16.mxu0 0
    %2781 = vmatpush2.bf16.msra.mxu0 %v2498
    %2782 = vmatprep.mubr.bf16.mxu0 %v2137
    %2783 = vmatmul.mubr.bf16.gmra.mxu0 %v2136
    %v2784 = vpop.f32.mrf.mxu0
    %v2785 = vadd.f32 %v2151, %v2784
    %v2786 = vpop.f32.mrf.mxu0
    %v2787 = vpop.f32.mrf.mxu0
    %v2788 = vadd.f32 %v2151, %v2787
    %v2789 = vpop.f32.mrf.mxu0
    %2790 = vdwg.mxu0
    %2791 = vmatprep.subr.bf16.mxu0 0
    %2792 = vmatpush1.bf16.msra.mxu0 %v2543
    %2793 = vmatprep.subr.bf16.mxu0 0
    %2794 = vmatpush1.bf16.msra.mxu0 %v2540
    %2795 = vmatprep.subr.bf16.mxu0 0
    %2796 = vmatpush1.bf16.msra.mxu0 %v2537
    %2797 = vmatprep.subr.bf16.mxu0 0
    %2798 = vmatpush1.bf16.msra.mxu0 %v2534
    %2799 = vmatprep.subr.bf16.mxu0 0
    %2800 = vmatpush1.bf16.msra.mxu0 %v2531
    %2801 = vmatprep.subr.bf16.mxu0 0
    %2802 = vmatpush1.bf16.msra.mxu0 %v2528
    %2803 = vmatprep.subr.bf16.mxu0 0
    %2804 = vmatpush1.bf16.msra.mxu0 %v2525
    %2805 = vmatprep.subr.bf16.mxu0 0
    %2806 = vmatpush1.bf16.msra.mxu0 %v2522
    %2807 = vmatprep.subr.bf16.mxu0 0
    %2808 = vmatpush2.bf16.msra.mxu0 %v2567
    %2809 = vmatprep.subr.bf16.mxu0 0
    %2810 = vmatpush2.bf16.msra.mxu0 %v2564
    %2811 = vmatprep.subr.bf16.mxu0 0
    %2812 = vmatpush2.bf16.msra.mxu0 %v2561
    %2813 = vmatprep.subr.bf16.mxu0 0
    %2814 = vmatpush2.bf16.msra.mxu0 %v2558
    %2815 = vmatprep.subr.bf16.mxu0 0
    %2816 = vmatpush2.bf16.msra.mxu0 %v2555
    %2817 = vmatprep.subr.bf16.mxu0 0
    %2818 = vmatpush2.bf16.msra.mxu0 %v2552
    %2819 = vmatprep.subr.bf16.mxu0 0
    %2820 = vmatpush2.bf16.msra.mxu0 %v2549
    %2821 = vmatprep.subr.bf16.mxu0 0
    %2822 = vmatpush2.bf16.msra.mxu0 %v2546
    %2823 = vmatprep.mubr.bf16.mxu0 %v2139
    %2824 = vmatmul.mubr.bf16.gmra.mxu0 %v2138
    %v2825 = vpop.f32.mrf.mxu0
    %v2826 = vadd.f32 %v2785, %v2825
    %v2827 = vpop.f32.mrf.mxu0
    %v2828 = vpop.f32.mrf.mxu0
    %v2829 = vadd.f32 %v2788, %v2828
    %v2830 = vpop.f32.mrf.mxu0
    %2831 = vdwg.mxu0
    %v2832 = vmax.f32 %v2742, 0.0
    %v2833 = vmax.f32 %v2744, 0.0
    %v2834 = vmax.f32 %v2826, 0.0
    %v2835 = vmax.f32 %v2746, 0.0
    %v2836 = vmax.f32 %v2748, 0.0
    %v2837 = vmax.f32 %v2829, 0.0
    %v2838 = vld [vmem:[#allocation5 + $0x300] sm:$0xff]
    %v2839 = vld [vmem:[#allocation5 + $0x30c] sm:$0xff]
    %v2840 = vld [vmem:[#allocation5 + $0x318] sm:$0xff]
    %v2841 = vld [vmem:[#allocation5 + $0x324] sm:$0xff]
    %v2842 = vld [vmem:[#allocation5 + $0x330] sm:$0xff]
    %v2843 = vld [vmem:[#allocation5 + $0x33c] sm:$0xff]
    %v2844 = vld [vmem:[#allocation5 + $0x348] sm:$0xff]
    %v2845 = vld [vmem:[#allocation5 + $0x354] sm:$0xff]
    %v2846 = vld [vmem:[#allocation5 + $0x360] sm:$0xff]
    %v2847 = vld [vmem:[#allocation5 + $0x36c] sm:$0xff]
    %v2848 = vld [vmem:[#allocation5 + $0x378] sm:$0xff]
    %v2849 = vld [vmem:[#allocation5 + $0x384] sm:$0xff]
    %v2850 = vld [vmem:[#allocation5 + $0x390] sm:$0xff]
    %v2851 = vld [vmem:[#allocation5 + $0x39c] sm:$0xff]
    %v2852 = vld [vmem:[#allocation5 + $0x3a8] sm:$0xff]
    %v2853 = vld [vmem:[#allocation5 + $0x3b4] sm:$0xff]
    %v2854 = vld [vmem:[#allocation5 + $0x3c0] sm:$0xff]
    %v2855 = vld [vmem:[#allocation5 + $0x3cc] sm:$0xff]
    %v2856 = vld [vmem:[#allocation5 + $0x3d8] sm:$0xff]
    %v2857 = vld [vmem:[#allocation5 + $0x3e4] sm:$0xff]
    %v2858 = vld [vmem:[#allocation5 + $0x3f0] sm:$0xff]
    %v2859 = vld [vmem:[#allocation5 + $0x3fc] sm:$0xff]
    %v2860 = vld [vmem:[#allocation5 + $0x408] sm:$0xff]
    %v2861 = vld [vmem:[#allocation5 + $0x414] sm:$0xff]
    %v2862 = vld [vmem:[#allocation5 + $0x420] sm:$0xff]
    %v2863 = vld [vmem:[#allocation5 + $0x42c] sm:$0xff]
    %v2864 = vld [vmem:[#allocation5 + $0x438] sm:$0xff]
    %v2865 = vld [vmem:[#allocation5 + $0x444] sm:$0xff]
    %v2866 = vld [vmem:[#allocation5 + $0x450] sm:$0xff]
    %v2867 = vld [vmem:[#allocation5 + $0x45c] sm:$0xff]
    %v2868 = vld [vmem:[#allocation5 + $0x468] sm:$0xff]
    %v2869 = vld [vmem:[#allocation5 + $0x474] sm:$0xff]
    %v2870 = vld [vmem:[#allocation5 + $0x480] sm:$0xff]
    %v2871 = vld [vmem:[#allocation5 + $0x48c] sm:$0xff]
    %v2872 = vld [vmem:[#allocation5 + $0x498] sm:$0xff]
    %v2873 = vld [vmem:[#allocation5 + $0x4a4] sm:$0xff]
    %v2874 = vld [vmem:[#allocation5 + $0x4b0] sm:$0xff]
    %v2875 = vld [vmem:[#allocation5 + $0x4bc] sm:$0xff]
    %v2876 = vld [vmem:[#allocation5 + $0x4c8] sm:$0xff]
    %v2877 = vld [vmem:[#allocation5 + $0x4d4] sm:$0xff]
    %v2878 = vld [vmem:[#allocation5 + $0x4e0] sm:$0xff]
    %v2879 = vld [vmem:[#allocation5 + $0x4ec] sm:$0xff]
    %v2880 = vld [vmem:[#allocation5 + $0x4f8] sm:$0xff]
    %v2881 = vld [vmem:[#allocation5 + $0x504] sm:$0xff]
    %v2882 = vld [vmem:[#allocation5 + $0x510] sm:$0xff]
    %v2883 = vld [vmem:[#allocation5 + $0x51c] sm:$0xff]
    %v2884 = vld [vmem:[#allocation5 + $0x528] sm:$0xff]
    %v2885 = vld [vmem:[#allocation5 + $0x534] sm:$0xff]
    %v2886 = vpack.c.bf16 %v2835, %v2832
    %v2887 = vpack.c.bf16 %v2836, %v2833
    %v2888 = vpack.c.bf16 %v2837, %v2834
    %v2889 = vlaneseq
    %v2890 = vshrl.u32 %v2889, 7
    %v2891 = vsub.s32 2, %v2890
    %v2892 = vrot.slane %v52, %v2891
    %v2893 = vlaneseq
    %v2894 = vshrl.u32 %v2893, 7
    %v2895 = vsub.s32 2, %v2894
    %v2896 = vrot.slane %v53, %v2895
    %v2945 = vunpack.c.l.b16 %v2838
    %v2946 = vunpack.c.h.b16 %v2838
    %v2947 = vunpack.c.l.b16 %v2839
    %v2948 = vunpack.c.h.b16 %v2839
    %v2949 = vunpack.c.l.b16 %v2840
    %v2950 = vunpack.c.h.b16 %v2840
    %v2951 = vunpack.c.l.b16 %v2841
    %v2952 = vunpack.c.h.b16 %v2841
    %v2953 = vunpack.c.l.b16 %v2842
    %v2954 = vunpack.c.h.b16 %v2842
    %v2955 = vunpack.c.l.b16 %v2843
    %v2956 = vunpack.c.h.b16 %v2843
    %v2957 = vunpack.c.l.b16 %v2844
    %v2958 = vunpack.c.h.b16 %v2844
    %v2959 = vunpack.c.l.b16 %v2845
    %v2960 = vunpack.c.h.b16 %v2845
    %v2961 = vunpack.c.l.b16 %v2846
    %v2962 = vunpack.c.h.b16 %v2846
    %v2963 = vunpack.c.l.b16 %v2847
    %v2964 = vunpack.c.h.b16 %v2847
    %v2965 = vunpack.c.l.b16 %v2848
    %v2966 = vunpack.c.h.b16 %v2848
    %v2967 = vunpack.c.l.b16 %v2849
    %v2968 = vunpack.c.h.b16 %v2849
    %v2969 = vunpack.c.l.b16 %v2850
    %v2970 = vunpack.c.h.b16 %v2850
    %v2971 = vunpack.c.l.b16 %v2851
    %v2972 = vunpack.c.h.b16 %v2851
    %v2973 = vunpack.c.l.b16 %v2852
    %v2974 = vunpack.c.h.b16 %v2852
    %v2975 = vunpack.c.l.b16 %v2853
    %v2976 = vunpack.c.h.b16 %v2853
    %v2977 = vunpack.c.l.b16 %v2854
    %v2978 = vunpack.c.h.b16 %v2854
    %v2979 = vunpack.c.l.b16 %v2855
    %v2980 = vunpack.c.h.b16 %v2855
    %v2981 = vunpack.c.l.b16 %v2856
    %v2982 = vunpack.c.h.b16 %v2856
    %v2983 = vunpack.c.l.b16 %v2857
    %v2984 = vunpack.c.h.b16 %v2857
    %v2985 = vunpack.c.l.b16 %v2858
    %v2986 = vunpack.c.h.b16 %v2858
    %v2987 = vunpack.c.l.b16 %v2859
    %v2988 = vunpack.c.h.b16 %v2859
    %v2989 = vunpack.c.l.b16 %v2860
    %v2990 = vunpack.c.h.b16 %v2860
    %v2991 = vunpack.c.l.b16 %v2861
    %v2992 = vunpack.c.h.b16 %v2861
    %v2993 = vunpack.c.l.b16 %v2862
    %v2994 = vunpack.c.h.b16 %v2862
    %v2995 = vunpack.c.l.b16 %v2863
    %v2996 = vunpack.c.h.b16 %v2863
    %v2997 = vunpack.c.l.b16 %v2864
    %v2998 = vunpack.c.h.b16 %v2864
    %v2999 = vunpack.c.l.b16 %v2865
    %v3000 = vunpack.c.h.b16 %v2865
    %v3001 = vunpack.c.l.b16 %v2866
    %v3002 = vunpack.c.h.b16 %v2866
    %v3003 = vunpack.c.l.b16 %v2867
    %v3004 = vunpack.c.h.b16 %v2867
    %v3005 = vunpack.c.l.b16 %v2868
    %v3006 = vunpack.c.h.b16 %v2868
    %v3007 = vunpack.c.l.b16 %v2869
    %v3008 = vunpack.c.h.b16 %v2869
    %v3009 = vunpack.c.l.b16 %v2870
    %v3010 = vunpack.c.h.b16 %v2870
    %v3011 = vunpack.c.l.b16 %v2871
    %v3012 = vunpack.c.h.b16 %v2871
    %v3013 = vunpack.c.l.b16 %v2872
    %v3014 = vunpack.c.h.b16 %v2872
    %v3015 = vunpack.c.l.b16 %v2873
    %v3016 = vunpack.c.h.b16 %v2873
    %v3017 = vunpack.c.l.b16 %v2874
    %v3018 = vunpack.c.h.b16 %v2874
    %v3019 = vunpack.c.l.b16 %v2875
    %v3020 = vunpack.c.h.b16 %v2875
    %v3021 = vunpack.c.l.b16 %v2876
    %v3022 = vunpack.c.h.b16 %v2876
    %v3023 = vunpack.c.l.b16 %v2877
    %v3024 = vunpack.c.h.b16 %v2877
    %v3025 = vunpack.c.l.b16 %v2878
    %v3026 = vunpack.c.h.b16 %v2878
    %v3027 = vunpack.c.l.b16 %v2879
    %v3028 = vunpack.c.h.b16 %v2879
    %v3029 = vunpack.c.l.b16 %v2880
    %v3030 = vunpack.c.h.b16 %v2880
    %v3031 = vunpack.c.l.b16 %v2881
    %v3032 = vunpack.c.h.b16 %v2881
    %v3033 = vunpack.c.l.b16 %v2882
    %v3034 = vunpack.c.h.b16 %v2882
    %v3035 = vunpack.c.l.b16 %v2883
    %v3036 = vunpack.c.h.b16 %v2883
    %v3037 = vunpack.c.l.b16 %v2884
    %v3038 = vunpack.c.h.b16 %v2884
    %v3039 = vunpack.c.l.b16 %v2885
    %v3040 = vunpack.c.h.b16 %v2885
    %v3041 = vpack.c.b16 %v2947, %v2945
    %v3042 = vpack.c.b16 %v2948, %v2946
    %v3043 = vpack.c.b16 %v2951, %v2949
    %v3044 = vpack.c.b16 %v2952, %v2950
    %v3045 = vpack.c.b16 %v2955, %v2953
    %v3046 = vpack.c.b16 %v2956, %v2954
    %v3047 = vpack.c.b16 %v2959, %v2957
    %v3048 = vpack.c.b16 %v2960, %v2958
    %v3049 = vpack.c.b16 %v2963, %v2961
    %v3050 = vpack.c.b16 %v2964, %v2962
    %v3051 = vpack.c.b16 %v2967, %v2965
    %v3052 = vpack.c.b16 %v2968, %v2966
    %v3053 = vpack.c.b16 %v2971, %v2969
    %v3054 = vpack.c.b16 %v2972, %v2970
    %v3055 = vpack.c.b16 %v2975, %v2973
    %v3056 = vpack.c.b16 %v2976, %v2974
    %v3057 = vpack.c.b16 %v2979, %v2977
    %v3058 = vpack.c.b16 %v2980, %v2978
    %v3059 = vpack.c.b16 %v2983, %v2981
    %v3060 = vpack.c.b16 %v2984, %v2982
    %v3061 = vpack.c.b16 %v2987, %v2985
    %v3062 = vpack.c.b16 %v2988, %v2986
    %v3063 = vpack.c.b16 %v2991, %v2989
    %v3064 = vpack.c.b16 %v2992, %v2990
    %v3065 = vpack.c.b16 %v2995, %v2993
    %v3066 = vpack.c.b16 %v2996, %v2994
    %v3067 = vpack.c.b16 %v2999, %v2997
    %v3068 = vpack.c.b16 %v3000, %v2998
    %v3069 = vpack.c.b16 %v3003, %v3001
    %v3070 = vpack.c.b16 %v3004, %v3002
    %v3071 = vpack.c.b16 %v3007, %v3005
    %v3072 = vpack.c.b16 %v3008, %v3006
    %v3073 = vpack.c.b16 %v3011, %v3009
    %v3074 = vpack.c.b16 %v3012, %v3010
    %v3075 = vpack.c.b16 %v3015, %v3013
    %v3076 = vpack.c.b16 %v3016, %v3014
    %v3077 = vpack.c.b16 %v3019, %v3017
    %v3078 = vpack.c.b16 %v3020, %v3018
    %v3079 = vpack.c.b16 %v3023, %v3021
    %v3080 = vpack.c.b16 %v3024, %v3022
    %v3081 = vpack.c.b16 %v3027, %v3025
    %v3082 = vpack.c.b16 %v3028, %v3026
    %v3083 = vpack.c.b16 %v3031, %v3029
    %v3084 = vpack.c.b16 %v3032, %v3030
    %v3085 = vpack.c.b16 %v3035, %v3033
    %v3086 = vpack.c.b16 %v3036, %v3034
    %v3087 = vpack.c.b16 %v3039, %v3037
    %v3088 = vpack.c.b16 %v3040, %v3038
    %3137 = vmatprep.subr.bf16.mxu0 %v3056
    %3138 = vmatpush1.bf16.msra.mxu0 %v3055
    %3139 = vmatprep.subr.bf16.mxu0 %v3054
    %3140 = vmatpush1.bf16.msra.mxu0 %v3053
    %3141 = vmatprep.subr.bf16.mxu0 %v3052
    %3142 = vmatpush1.bf16.msra.mxu0 %v3051
    %3143 = vmatprep.subr.bf16.mxu0 %v3050
    %3144 = vmatpush1.bf16.msra.mxu0 %v3049
    %3145 = vmatprep.subr.bf16.mxu0 %v3048
    %3146 = vmatpush1.bf16.msra.mxu0 %v3047
    %3147 = vmatprep.subr.bf16.mxu0 %v3046
    %3148 = vmatpush1.bf16.msra.mxu0 %v3045
    %3149 = vmatprep.subr.bf16.mxu0 %v3044
    %3150 = vmatpush1.bf16.msra.mxu0 %v3043
    %3151 = vmatprep.subr.bf16.mxu0 %v3042
    %3152 = vmatpush1.bf16.msra.mxu0 %v3041
    %3153 = vmatprep.subr.bf16.mxu0 %v3072
    %3154 = vmatpush2.bf16.msra.mxu0 %v3071
    %3155 = vmatprep.subr.bf16.mxu0 %v3070
    %3156 = vmatpush2.bf16.msra.mxu0 %v3069
    %3157 = vmatprep.subr.bf16.mxu0 %v3068
    %3158 = vmatpush2.bf16.msra.mxu0 %v3067
    %3159 = vmatprep.subr.bf16.mxu0 %v3066
    %3160 = vmatpush2.bf16.msra.mxu0 %v3065
    %3161 = vmatprep.subr.bf16.mxu0 %v3064
    %3162 = vmatpush2.bf16.msra.mxu0 %v3063
    %3163 = vmatprep.subr.bf16.mxu0 %v3062
    %3164 = vmatpush2.bf16.msra.mxu0 %v3061
    %3165 = vmatprep.subr.bf16.mxu0 %v3060
    %3166 = vmatpush2.bf16.msra.mxu0 %v3059
    %3167 = vmatprep.subr.bf16.mxu0 %v3058
    %3168 = vmatpush2.bf16.msra.mxu0 %v3057
    %3169 = vmatprep.mubr.bf16.mxu0 %v2887
    %3170 = vmatmul.mubr.bf16.gmra.mxu0 %v2886
    %v3171 = vpop.f32.mrf.mxu0
    %v3172 = vadd.f32 %v2892, %v3171
    %v3173 = vpop.f32.mrf.mxu0
    %v3174 = vadd.f32 %v2896, %v3173
    %v3175 = vpop.f32.mrf.mxu0
    %v3176 = vadd.f32 %v2892, %v3175
    %v3177 = vpop.f32.mrf.mxu0
    %v3178 = vadd.f32 %v2896, %v3177
    %3179 = vdwg.mxu0
    %3180 = vmatprep.subr.bf16.mxu0 %v3088
    %3181 = vmatpush1.bf16.msra.mxu0 %v3087
    %3182 = vmatprep.subr.bf16.mxu0 %v3086
    %3183 = vmatpush1.bf16.msra.mxu0 %v3085
    %3184 = vmatprep.subr.bf16.mxu0 %v3084
    %3185 = vmatpush1.bf16.msra.mxu0 %v3083
    %3186 = vmatprep.subr.bf16.mxu0 %v3082
    %3187 = vmatpush1.bf16.msra.mxu0 %v3081
    %3188 = vmatprep.subr.bf16.mxu0 %v3080
    %3189 = vmatpush1.bf16.msra.mxu0 %v3079
    %3190 = vmatprep.subr.bf16.mxu0 %v3078
    %3191 = vmatpush1.bf16.msra.mxu0 %v3077
    %3192 = vmatprep.subr.bf16.mxu0 %v3076
    %3193 = vmatpush1.bf16.msra.mxu0 %v3075
    %3194 = vmatprep.subr.bf16.mxu0 %v3074
    %3195 = vmatpush1.bf16.msra.mxu0 %v3073
    %3196 = vmatprep.subr.bf16.mxu0 0
    %3197 = vmatpush2.bf16.msra.mxu0 0
    %3198 = vmatprep.subr.bf16.mxu0 0
    %3199 = vmatpush2.bf16.msra.mxu0 0
    %3200 = vmatprep.subr.bf16.mxu0 0
    %3201 = vmatpush2.bf16.msra.mxu0 0
    %3202 = vmatprep.subr.bf16.mxu0 0
    %3203 = vmatpush2.bf16.msra.mxu0 0
    %3204 = vmatprep.subr.bf16.mxu0 0
    %3205 = vmatpush2.bf16.msra.mxu0 0
    %3206 = vmatprep.subr.bf16.mxu0 0
    %3207 = vmatpush2.bf16.msra.mxu0 0
    %3208 = vmatprep.subr.bf16.mxu0 0
    %3209 = vmatpush2.bf16.msra.mxu0 0
    %3210 = vmatprep.subr.bf16.mxu0 0
    %3211 = vmatpush2.bf16.msra.mxu0 0
    %3212 = vmatprep.mubr.bf16.mxu0 0
    %3213 = vmatmul.mubr.bf16.gmra.mxu0 %v2888
    %v3214 = vpop.f32.mrf.mxu0
    %v3215 = vadd.f32 %v3172, %v3214
    %v3216 = vpop.f32.mrf.mxu0
    %v3217 = vadd.f32 %v3174, %v3216
    %v3218 = vpop.f32.mrf.mxu0
    %v3219 = vadd.f32 %v3176, %v3218
    %v3220 = vpop.f32.mrf.mxu0
    %v3221 = vadd.f32 %v3178, %v3220
    %3222 = vdwg.mxu0
    %v3223 = vmax.f32 %v3215, 0.0
    %v3224 = vmax.f32 %v3217, 0.0
    %v3225 = vmax.f32 %v3219, 0.0
    %v3226 = vmax.f32 %v3221, 0.0
    %v3227 = vld [vmem:[%s3] sm:$0xf]
    %v3228 = vld [vmem:[%s3 + $0x4] sm:$0xf]
    %v3229 = vld [vmem:[%s3 + $0x8] sm:$0xf]
    %v3230 = vld [vmem:[%s3 + $0xc] sm:$0xf]
    %v3231 = vld [vmem:[%s3 + $0x10] sm:$0xf]
    %v3232 = vld [vmem:[%s3 + $0x14] sm:$0xf]
    %v3233 = vld [vmem:[%s3 + $0x18] sm:$0xf]
    %v3234 = vld [vmem:[%s3 + $0x1c] sm:$0xf]
    %v3235 = vld [vmem:[%s3 + $0x20] sm:$0xf]
    %v3236 = vld [vmem:[%s3 + $0x24] sm:$0xf]
    %v3237 = vld [vmem:[%s3 + $0x28] sm:$0xf]
    %v3238 = vld [vmem:[%s3 + $0x2c] sm:$0xf]
    %v3239 = vld [vmem:[%s3 + $0x30] sm:$0xf]
    %v3240 = vld [vmem:[%s3 + $0x34] sm:$0xf]
    %v3241 = vld [vmem:[%s3 + $0x38] sm:$0xf]
    %v3242 = vld [vmem:[%s3 + $0x3c] sm:$0xf]
    %v3243 = vld [vmem:[%s3 + $0x40] sm:$0xf]
    %v3244 = vld [vmem:[%s3 + $0x44] sm:$0xf]
    %v3245 = vld [vmem:[%s3 + $0x48] sm:$0xf]
    %v3246 = vld [vmem:[%s3 + $0x4c] sm:$0xf]
    %v3247 = vld [vmem:[%s3 + $0x50] sm:$0xf]
    %v3248 = vld [vmem:[%s3 + $0x54] sm:$0xf]
    %v3249 = vld [vmem:[%s3 + $0x58] sm:$0xf]
    %v3250 = vld [vmem:[%s3 + $0x5c] sm:$0xf]
    %v3251 = vld [vmem:[%s3 + $0x60] sm:$0xf]
    %v3252 = vld [vmem:[%s3 + $0x64] sm:$0xf]
    %v3253 = vld [vmem:[%s3 + $0x68] sm:$0xf]
    %v3254 = vld [vmem:[%s3 + $0x6c] sm:$0xf]
    %v3255 = vld [vmem:[%s3 + $0x70] sm:$0xf]
    %v3256 = vld [vmem:[%s3 + $0x74] sm:$0xf]
    %v3257 = vld [vmem:[%s3 + $0x78] sm:$0xf]
    %v3258 = vld [vmem:[%s3 + $0x7c] sm:$0xf]
    %v3259 = vpack.c.bf16 %v3225, %v3223
    %v3260 = vpack.c.bf16 %v3226, %v3224
    %v3261 = vlaneseq
    %v3262 = vshrl.u32 %v3261, 7
    %v3263 = vsub.s32 3, %v3262
    %v3264 = vrot.slane %v52, %v3263
    %v3297 = vunpack.c.l.b16 %v3227
    %v3298 = vunpack.c.l.b16 %v3228
    %v3299 = vunpack.c.l.b16 %v3229
    %v3300 = vunpack.c.l.b16 %v3230
    %v3301 = vunpack.c.l.b16 %v3231
    %v3302 = vunpack.c.l.b16 %v3232
    %v3303 = vunpack.c.l.b16 %v3233
    %v3304 = vunpack.c.l.b16 %v3234
    %v3305 = vunpack.c.l.b16 %v3235
    %v3306 = vunpack.c.l.b16 %v3236
    %v3307 = vunpack.c.l.b16 %v3237
    %v3308 = vunpack.c.l.b16 %v3238
    %v3309 = vunpack.c.l.b16 %v3239
    %v3310 = vunpack.c.l.b16 %v3240
    %v3311 = vunpack.c.l.b16 %v3241
    %v3312 = vunpack.c.l.b16 %v3242
    %v3313 = vunpack.c.l.b16 %v3243
    %v3314 = vunpack.c.l.b16 %v3244
    %v3315 = vunpack.c.l.b16 %v3245
    %v3316 = vunpack.c.l.b16 %v3246
    %v3317 = vunpack.c.l.b16 %v3247
    %v3318 = vunpack.c.l.b16 %v3248
    %v3319 = vunpack.c.l.b16 %v3249
    %v3320 = vunpack.c.l.b16 %v3250
    %v3321 = vunpack.c.l.b16 %v3251
    %v3322 = vunpack.c.l.b16 %v3252
    %v3323 = vunpack.c.l.b16 %v3253
    %v3324 = vunpack.c.l.b16 %v3254
    %v3325 = vunpack.c.l.b16 %v3255
    %v3326 = vunpack.c.l.b16 %v3256
    %v3327 = vunpack.c.l.b16 %v3257
    %v3328 = vunpack.c.l.b16 %v3258
    %v3329 = vpack.c.b16 %v3298, %v3297
    %v3330 = vpack.c.b16 %v3300, %v3299
    %v3331 = vpack.c.b16 %v3302, %v3301
    %v3332 = vpack.c.b16 %v3304, %v3303
    %v3333 = vpack.c.b16 %v3306, %v3305
    %v3334 = vpack.c.b16 %v3308, %v3307
    %v3335 = vpack.c.b16 %v3310, %v3309
    %v3336 = vpack.c.b16 %v3312, %v3311
    %v3337 = vpack.c.b16 %v3314, %v3313
    %v3338 = vpack.c.b16 %v3316, %v3315
    %v3339 = vpack.c.b16 %v3318, %v3317
    %v3340 = vpack.c.b16 %v3320, %v3319
    %v3341 = vpack.c.b16 %v3322, %v3321
    %v3342 = vpack.c.b16 %v3324, %v3323
    %v3343 = vpack.c.b16 %v3326, %v3325
    %v3344 = vpack.c.b16 %v3328, %v3327
    %3361 = vmatprep.subr.bf16.mxu0 0
    %3362 = vmatpush1.bf16.msra.mxu0 %v3336
    %3363 = vmatprep.subr.bf16.mxu0 0
    %3364 = vmatpush1.bf16.msra.mxu0 %v3335
    %3365 = vmatprep.subr.bf16.mxu0 0
    %3366 = vmatpush1.bf16.msra.mxu0 %v3334
    %3367 = vmatprep.subr.bf16.mxu0 0
    %3368 = vmatpush1.bf16.msra.mxu0 %v3333
    %3369 = vmatprep.subr.bf16.mxu0 0
    %3370 = vmatpush1.bf16.msra.mxu0 %v3332
    %3371 = vmatprep.subr.bf16.mxu0 0
    %3372 = vmatpush1.bf16.msra.mxu0 %v3331
    %3373 = vmatprep.subr.bf16.mxu0 0
    %3374 = vmatpush1.bf16.msra.mxu0 %v3330
    %3375 = vmatprep.subr.bf16.mxu0 0
    %3376 = vmatpush1.bf16.msra.mxu0 %v3329
    %3377 = vmatprep.subr.bf16.mxu0 0
    %3378 = vmatpush2.bf16.msra.mxu0 %v3344
    %3379 = vmatprep.subr.bf16.mxu0 0
    %3380 = vmatpush2.bf16.msra.mxu0 %v3343
    %3381 = vmatprep.subr.bf16.mxu0 0
    %3382 = vmatpush2.bf16.msra.mxu0 %v3342
    %3383 = vmatprep.subr.bf16.mxu0 0
    %3384 = vmatpush2.bf16.msra.mxu0 %v3341
    %3385 = vmatprep.subr.bf16.mxu0 0
    %3386 = vmatpush2.bf16.msra.mxu0 %v3340
    %3387 = vmatprep.subr.bf16.mxu0 0
    %3388 = vmatpush2.bf16.msra.mxu0 %v3339
    %3389 = vmatprep.subr.bf16.mxu0 0
    %3390 = vmatpush2.bf16.msra.mxu0 %v3338
    %3391 = vmatprep.subr.bf16.mxu0 0
    %3392 = vmatpush2.bf16.msra.mxu0 %v3337
    %3393 = vmatprep.mubr.bf16.mxu0 %v3260
    %3394 = vmatmul.mubr.bf16.gmra.mxu0 %v3259
    %v3395 = vpop.f32.mrf.mxu0
    %v3396 = vadd.f32 %v3264, %v3395
    %v3397 = vpop.f32.mrf.mxu0
    %v3398 = vpop.f32.mrf.mxu0
    %v3399 = vadd.f32 %v3264, %v3398
    %v3400 = vpop.f32.mrf.mxu0
    %3401 = vdwg.mxu0
    %v3402 = vmax.f32 %v3396, 0.0
    %v3403 = vmax.f32 %v3399, 0.0
    %v3404 = vld [vmem:[%s3 + $0x80] sm:$0xf]
    %v3405 = vld [vmem:[%s3 + $0x84] sm:$0xf]
    %v3406 = vld [vmem:[%s3 + $0x88] sm:$0xf]
    %v3407 = vld [vmem:[%s3 + $0x8c] sm:$0xf]
    %v3408 = vld [vmem:[%s3 + $0x90] sm:$0xf]
    %v3409 = vld [vmem:[%s3 + $0x94] sm:$0xf]
    %v3410 = vld [vmem:[%s3 + $0x98] sm:$0xf]
    %v3411 = vld [vmem:[%s3 + $0x9c] sm:$0xf]
    %v3412 = vld [vmem:[%s3 + $0xa0] sm:$0xf]
    %v3413 = vld [vmem:[%s3 + $0xa4] sm:$0xf]
    %v3414 = vld [vmem:[%s3 + $0xa8] sm:$0xf]
    %v3415 = vld [vmem:[%s3 + $0xac] sm:$0xf]
    %v3416 = vld [vmem:[%s3 + $0xb0] sm:$0xf]
    %v3417 = vld [vmem:[%s3 + $0xb4] sm:$0xf]
    %v3418 = vld [vmem:[%s3 + $0xb8] sm:$0xf]
    %v3419 = vld [vmem:[%s3 + $0xbc] sm:$0xf]
    %v3420 = vpack.c.bf16 %v3403, %v3402
    %v3421 = vlaneseq
    %v3422 = vshrl.u32 %v3421, 7
    %v3423 = vsub.s32 4, %v3422
    %v3424 = vrot.slane %v52, %v3423
    %v3441 = vunpack.c.l.b16 %v3404
    %v3442 = vunpack.c.l.b16 %v3405
    %v3443 = vunpack.c.l.b16 %v3406
    %v3444 = vunpack.c.l.b16 %v3407
    %v3445 = vunpack.c.l.b16 %v3408
    %v3446 = vunpack.c.l.b16 %v3409
    %v3447 = vunpack.c.l.b16 %v3410
    %v3448 = vunpack.c.l.b16 %v3411
    %v3449 = vunpack.c.l.b16 %v3412
    %v3450 = vunpack.c.l.b16 %v3413
    %v3451 = vunpack.c.l.b16 %v3414
    %v3452 = vunpack.c.l.b16 %v3415
    %v3453 = vunpack.c.l.b16 %v3416
    %v3454 = vunpack.c.l.b16 %v3417
    %v3455 = vunpack.c.l.b16 %v3418
    %v3456 = vunpack.c.l.b16 %v3419
    %v3457 = vpack.c.b16 %v3442, %v3441
    %v3458 = vpack.c.b16 %v3444, %v3443
    %v3459 = vpack.c.b16 %v3446, %v3445
    %v3460 = vpack.c.b16 %v3448, %v3447
    %v3461 = vpack.c.b16 %v3450, %v3449
    %v3462 = vpack.c.b16 %v3452, %v3451
    %v3463 = vpack.c.b16 %v3454, %v3453
    %v3464 = vpack.c.b16 %v3456, %v3455
    %3473 = vmatprep.subr.bf16.mxu0 0
    %3474 = vmatpush1.bf16.msra.mxu0 %v3464
    %3475 = vmatprep.subr.bf16.mxu0 0
    %3476 = vmatpush1.bf16.msra.mxu0 %v3463
    %3477 = vmatprep.subr.bf16.mxu0 0
    %3478 = vmatpush1.bf16.msra.mxu0 %v3462
    %3479 = vmatprep.subr.bf16.mxu0 0
    %3480 = vmatpush1.bf16.msra.mxu0 %v3461
    %3481 = vmatprep.subr.bf16.mxu0 0
    %3482 = vmatpush1.bf16.msra.mxu0 %v3460
    %3483 = vmatprep.subr.bf16.mxu0 0
    %3484 = vmatpush1.bf16.msra.mxu0 %v3459
    %3485 = vmatprep.subr.bf16.mxu0 0
    %3486 = vmatpush1.bf16.msra.mxu0 %v3458
    %3487 = vmatprep.subr.bf16.mxu0 0
    %3488 = vmatpush1.bf16.msra.mxu0 %v3457
    %3489 = vmatprep.subr.bf16.mxu0 0
    %3490 = vmatpush2.bf16.msra.mxu0 0
    %3491 = vmatprep.subr.bf16.mxu0 0
    %3492 = vmatpush2.bf16.msra.mxu0 0
    %3493 = vmatprep.subr.bf16.mxu0 0
    %3494 = vmatpush2.bf16.msra.mxu0 0
    %3495 = vmatprep.subr.bf16.mxu0 0
    %3496 = vmatpush2.bf16.msra.mxu0 0
    %3497 = vmatprep.subr.bf16.mxu0 0
    %3498 = vmatpush2.bf16.msra.mxu0 0
    %3499 = vmatprep.subr.bf16.mxu0 0
    %3500 = vmatpush2.bf16.msra.mxu0 0
    %3501 = vmatprep.subr.bf16.mxu0 0
    %3502 = vmatpush2.bf16.msra.mxu0 0
    %3503 = vmatprep.subr.bf16.mxu0 0
    %3504 = vmatpush2.bf16.msra.mxu0 0
    %3505 = vmatprep.mubr.bf16.mxu0 0
    %3506 = vmatmul.mubr.bf16.gmra.mxu0 %v3420
    %v3507 = vpop.f32.mrf.mxu0
    %v3508 = vadd.f32 %v3424, %v3507
    %v3509 = vpop.f32.mrf.mxu0
    %v3510 = vpop.f32.mrf.mxu0
    %v3511 = vadd.f32 %v3424, %v3510
    %v3512 = vpop.f32.mrf.mxu0
    %3513 = vdwg.mxu0
    %v3514 = vmax.f32 %v3508, 0.0
    %v3515 = vmax.f32 %v3511, 0.0
    %v3516 = vld [vmem:[%s3 + $0xc0] sm:$0xf]
    %v3517 = vld [vmem:[%s3 + $0xc4] sm:$0xf]
    %v3518 = vld [vmem:[%s3 + $0xc8] sm:$0xf]
    %v3519 = vld [vmem:[%s3 + $0xcc] sm:$0xf]
    %v3520 = vld [vmem:[%s3 + $0xd0] sm:$0xf]
    %v3521 = vld [vmem:[%s3 + $0xd4] sm:$0xf]
    %v3522 = vld [vmem:[%s3 + $0xd8] sm:$0xf]
    %v3523 = vld [vmem:[%s3 + $0xdc] sm:$0xf]
    %v3524 = vld [vmem:[%s3 + $0xe0] sm:$0xf]
    %v3525 = vld [vmem:[%s3 + $0xe4] sm:$0xf]
    %v3526 = vld [vmem:[%s3 + $0xe8] sm:$0xf]
    %v3527 = vld [vmem:[%s3 + $0xec] sm:$0xf]
    %v3528 = vld [vmem:[%s3 + $0xf0] sm:$0xf]
    %v3529 = vld [vmem:[%s3 + $0xf4] sm:$0xf]
    %v3530 = vld [vmem:[%s3 + $0xf8] sm:$0xf]
    %v3531 = vld [vmem:[%s3 + $0xfc] sm:$0xf]
    %v3532 = vpack.c.bf16 %v3515, %v3514
    %v3533 = vlaneseq
    %v3534 = vshrl.u32 %v3533, 7
    %v3535 = vsub.s32 5, %v3534
    %v3536 = vrot.slane %v52, %v3535
    %v3553 = vunpack.c.l.b16 %v3516
    %v3554 = vunpack.c.l.b16 %v3517
    %v3555 = vunpack.c.l.b16 %v3518
    %v3556 = vunpack.c.l.b16 %v3519
    %v3557 = vunpack.c.l.b16 %v3520
    %v3558 = vunpack.c.l.b16 %v3521
    %v3559 = vunpack.c.l.b16 %v3522
    %v3560 = vunpack.c.l.b16 %v3523
    %v3561 = vunpack.c.l.b16 %v3524
    %v3562 = vunpack.c.l.b16 %v3525
    %v3563 = vunpack.c.l.b16 %v3526
    %v3564 = vunpack.c.l.b16 %v3527
    %v3565 = vunpack.c.l.b16 %v3528
    %v3566 = vunpack.c.l.b16 %v3529
    %v3567 = vunpack.c.l.b16 %v3530
    %v3568 = vunpack.c.l.b16 %v3531
    %v3569 = vpack.c.b16 %v3554, %v3553
    %v3570 = vpack.c.b16 %v3556, %v3555
    %v3571 = vpack.c.b16 %v3558, %v3557
    %v3572 = vpack.c.b16 %v3560, %v3559
    %v3573 = vpack.c.b16 %v3562, %v3561
    %v3574 = vpack.c.b16 %v3564, %v3563
    %v3575 = vpack.c.b16 %v3566, %v3565
    %v3576 = vpack.c.b16 %v3568, %v3567
    %3585 = vmatprep.subr.bf16.mxu0 0
    %3586 = vmatpush1.bf16.msra.mxu0 %v3576
    %3587 = vmatprep.subr.bf16.mxu0 0
    %3588 = vmatpush1.bf16.msra.mxu0 %v3575
    %3589 = vmatprep.subr.bf16.mxu0 0
    %3590 = vmatpush1.bf16.msra.mxu0 %v3574
    %3591 = vmatprep.subr.bf16.mxu0 0
    %3592 = vmatpush1.bf16.msra.mxu0 %v3573
    %3593 = vmatprep.subr.bf16.mxu0 0
    %3594 = vmatpush1.bf16.msra.mxu0 %v3572
    %3595 = vmatprep.subr.bf16.mxu0 0
    %3596 = vmatpush1.bf16.msra.mxu0 %v3571
    %3597 = vmatprep.subr.bf16.mxu0 0
    %3598 = vmatpush1.bf16.msra.mxu0 %v3570
    %3599 = vmatprep.subr.bf16.mxu0 0
    %3600 = vmatpush1.bf16.msra.mxu0 %v3569
    %3601 = vmatprep.subr.bf16.mxu0 0
    %3602 = vmatpush2.bf16.msra.mxu0 0
    %3603 = vmatprep.subr.bf16.mxu0 0
    %3604 = vmatpush2.bf16.msra.mxu0 0
    %3605 = vmatprep.subr.bf16.mxu0 0
    %3606 = vmatpush2.bf16.msra.mxu0 0
    %3607 = vmatprep.subr.bf16.mxu0 0
    %3608 = vmatpush2.bf16.msra.mxu0 0
    %3609 = vmatprep.subr.bf16.mxu0 0
    %3610 = vmatpush2.bf16.msra.mxu0 0
    %3611 = vmatprep.subr.bf16.mxu0 0
    %3612 = vmatpush2.bf16.msra.mxu0 0
    %3613 = vmatprep.subr.bf16.mxu0 0
    %3614 = vmatpush2.bf16.msra.mxu0 0
    %3615 = vmatprep.subr.bf16.mxu0 0
    %3616 = vmatpush2.bf16.msra.mxu0 0
    %3617 = vmatprep.mubr.bf16.mxu0 0
    %3618 = vmatmul.mubr.bf16.gmra.mxu0 %v3532
    %v3619 = vpop.f32.mrf.mxu0
    %v3620 = vadd.f32 %v3536, %v3619
    %v3621 = vpop.f32.mrf.mxu0
    %v3622 = vpop.f32.mrf.mxu0
    %v3623 = vadd.f32 %v3536, %v3622
    %v3624 = vpop.f32.mrf.mxu0
    %3625 = vdwg.mxu0
    %s3626 = smul.u32 0, 16
    %v3627 = vlaneseq
    %v3628 = vshrl.u32 %v3627, 7
    %v3629 = vadd.s32 %v3628, 8
    %v3630 = vstv %s3626
    %v3631 = vadd.s32 %v3630, %v3628
    %v3632 = vadd.s32 %v3630, %v3629
    %vm3633 = vcmp.lt.s32.totalorder %v3631, 2
    %vm3634 = vcmp.lt.s32.totalorder %v3632, 2
    %v3635 = vsel %vm3633, %v3620, 0.0
    %v3636 = vsel %vm3634, %v3623, 0.0
    %v3637 = vadd.f32 %v3635, %v3636
    %v3638 = vrot.slane %v3637, 4
    %v3639 = vadd.f32 %v3637, %v3638
    %v3640 = vrot.slane %v3639, 2
    %v3641 = vadd.f32 %v3639, %v3640
    %v3642 = vrot.slane %v3641, 1
    %v3643 = vadd.f32 %v3641, %v3642
    %v3644 = vmul.f32 %v3643, 0.5
    %p3645 = scmp.eq.s32.totalorder 0, 0
    // Predicated region
    $region30: #{mlp_d_forward.1} parent=1 // pred_check
      %p3646 = pneg %p3645
    $region31: #{mlp_d_forward.1} parent=1 // pred_check_branch
      %3648 = sbr.rel (%p3646) target = $region33
    $region32: #{mlp_d_forward.1} parent=1 // pred_region
      %3649 = vst [vmem:[#allocation7] sm:$0x1] 0.0
    $region33: #{mlp_d_forward.1} parent=1 // pred_fallthru
      _
    %v3650 = vld [vmem:[#allocation7] sm:$0x1]
    %v3651 = vadd.f32 %v3650, %v3644
    %3652 = vst [vmem:[#allocation7] sm:$0x1] %v3651
    // Predicated region
    $region34: #{mlp_d_forward.1} parent=1 // pred_check
      _
    $region35: #{mlp_d_forward.1} parent=1 // pred_check_branch
      %3654 = sbr.rel (0) target = $region37
    $region36: #{mlp_d_forward.1} parent=1 // pred_region
      %s3656 = ssub.s32 16, 16
      %3657 = vsyncadd [#allocation4], %s3656
      %s3659 = sshll.u32 [#allocation7], 4
      %s3660 = int_to_ptr.vmem [resolvable:$true] %s3659
      %3662 = dma.vmem_to_hbm [thread:$0]  %s3660, 16, %s5, [#allocation4]
    $region37: #{mlp_d_forward.1} parent=1 // pred_fallthru
      _
    // Predicated region
    $region38: #{mlp_d_forward.1} parent=1 // pred_check
      _
    $region39: #{mlp_d_forward.1} parent=1 // pred_check_branch
      %3664 = sbr.rel (0) target = $region41
    $region40: #{mlp_d_forward.1} parent=1 // pred_region
      %3665 = dma.done [#allocation4], 16
    $region41: #{mlp_d_forward.1} parent=1 // pred_fallthru
      _
    %3666 = vsyncpa [#allocation3], 1
    %3667 = vsyncpa [#allocation6], 1
    %3668 = vsyncpa [#allocation4], 1

</llo_original>
